<compile_context>
chip_gen: v7x
topology: tpu7x:2x2x1
jax: 0.10.0
libtpu: 0.0.40
codegen_flags: <defaults>
</compile_context>

<pallas_src>
import functools

import jax
import jax.numpy as jnp
import numpy as np
from jax import lax
from jax.experimental import pallas as pl
from jax.experimental.pallas import tpu as pltpu


# ----------------------------- Pallas multi-layer LSTM kernel ----------------------------- #

def _make_encoder_lstm_kernel(n_layers, T, Bp, H):
    """Builds a kernel running all LSTM layers (and the full time loop) in one invocation.

    Ref order (Pallas convention: inputs..., outputs..., scratch...):
      inputs : gx0 (T*Bp, 4H)            layer-0 input gates, bias folded in (precomputed in XLA)
               w_hh_0 (H, 4H)
               [w_ih_l (H,4H), w_hh_l (H,4H), b_l (1,4H)]  for l = 1..n_layers-1
      outputs: h_out (n_layers, Bp, H), c_out (n_layers, Bp, H)
      scratch: y_sc (T*Bp, H) f32        hidden-state slab of the current layer (never leaves VMEM)
               gx_sc (T*Bp, 4H) f32      input gates of the current layer (only if n_layers > 1)

    Gate column order is (i, f, o, g): one sigmoid over [:, :3H], one tanh over [:, 3H:].
    """
    n_in = 2 + 3 * (n_layers - 1)

    def kernel(*refs):
        in_refs = refs[:n_in]
        h_out_ref = refs[n_in]
        c_out_ref = refs[n_in + 1]
        scratch = refs[n_in + 2:]
        y_sc = scratch[0]
        gx_sc = scratch[1] if n_layers > 1 else None

        def run_layer(gx_ref, whh, layer_idx):
            # gx_ref: (T*Bp, 4H) ref with the precomputed input projection (+bias) for this layer.
            # whh:    (H, 4H) loaded value (hoisted out of the time loop).
            def step(t, carry):
                h, c = carry
                off = pl.multiple_of(t * Bp, Bp)
                gx_t = gx_ref[pl.ds(off, Bp), :]                       # (Bp, 4H)
                gates = gx_t + jnp.dot(h, whh,
                                       preferred_element_type=jnp.float32)
                sig = jax.nn.sigmoid(gates[:, :3 * H])                 # i, f, o together
                i_g = sig[:, 0 * H:1 * H]
                f_g = sig[:, 1 * H:2 * H]
                o_g = sig[:, 2 * H:3 * H]
                g_g = jnp.tanh(gates[:, 3 * H:4 * H])
                c_new = f_g * c + i_g * g_g
                h_new = o_g * jnp.tanh(c_new)
                y_sc[pl.ds(off, Bp), :] = h_new                        # stays in VMEM
                return h_new, c_new

            h0 = jnp.zeros((Bp, H), jnp.float32)
            c0 = jnp.zeros((Bp, H), jnp.float32)
            h_n, c_n = lax.fori_loop(0, T, step, (h0, c0), unroll=(T <= 16))
            h_out_ref[layer_idx] = h_n
            c_out_ref[layer_idx] = c_n

        # Layer 0: input projection was hoisted outside the kernel.
        run_layer(in_refs[0], in_refs[1][...], 0)

        # Layers 1..L-1: one big MXU matmul for the input projection, then the recurrence.
        for l in range(1, n_layers):
            wih_ref = in_refs[2 + 3 * (l - 1)]
            whh_ref = in_refs[3 + 3 * (l - 1)]
            b_ref = in_refs[4 + 3 * (l - 1)]
            gx_sc[...] = (jnp.dot(y_sc[...], wih_ref[...],
                                  preferred_element_type=jnp.float32)
                          + b_ref[...])
            run_layer(gx_sc, whh_ref[...], l)

    return kernel


def _multilayer_lstm_pallas(gx0, layer_weights, T, Bp, H):
    """gx0: (T*Bp, 4H) layer-0 input gates (bias folded in), gate order (i,f,o,g).
    layer_weights[0] = (w_hh_0,); layer_weights[l>=1] = (w_ih_l, w_hh_l, b_l).
    Returns h_n, c_n each (n_layers, Bp, H) float32."""
    n_layers = len(layer_weights)

    inputs = [gx0, layer_weights[0][0]]
    in_specs = [
        pl.BlockSpec((T * Bp, 4 * H), lambda i: (0, 0)),
        pl.BlockSpec((H, 4 * H), lambda i: (0, 0)),
    ]
    for l in range(1, n_layers):
        w_ih, w_hh, b = layer_weights[l]
        inputs += [w_ih, w_hh, b]
        in_specs += [
            pl.BlockSpec((H, 4 * H), lambda i: (0, 0)),
            pl.BlockSpec((H, 4 * H), lambda i: (0, 0)),
            pl.BlockSpec((1, 4 * H), lambda i: (0, 0)),
        ]

    scratch_shapes = [pltpu.VMEM((T * Bp, H), jnp.float32)]
    if n_layers > 1:
        scratch_shapes.append(pltpu.VMEM((T * Bp, 4 * H), jnp.float32))

    kernel = _make_encoder_lstm_kernel(n_layers, T, Bp, H)
    # TODO(synk): for large T the (T*Bp, ...) VMEM slabs should be chunked over time
    # (blocked time grid / emit_pipeline); fine at these shapes.
    h_n, c_n = pl.pallas_call(
        kernel,
        out_shape=(
            jax.ShapeDtypeStruct((n_layers, Bp, H), jnp.float32),
            jax.ShapeDtypeStruct((n_layers, Bp, H), jnp.float32),
        ),
        grid_spec=pltpu.PrefetchScalarGridSpec(
            num_scalar_prefetch=0,
            grid=(1,),
            in_specs=in_specs,
            out_specs=[
                pl.BlockSpec((n_layers, Bp, H), lambda i: (0, 0, 0)),
                pl.BlockSpec((n_layers, Bp, H), lambda i: (0, 0, 0)),
            ],
            scratch_shapes=scratch_shapes,
        ),
        compiler_params=pltpu.CompilerParams(
            dimension_semantics=("arbitrary",)),
    )(*inputs)
    return h_n, c_n


# ----------------------------- Encoder wrapper ----------------------------- #

def init_encoder_params(key, input_dim, emb_dim, hid_dim, n_layers):
    """Parameters kept in PyTorch-equivalent layout: W pre-transposed to (D_in, 4H),
    gate column order (i, f, g, o), bias = b_ih + b_hh."""
    k = 1.0 / np.sqrt(hid_dim)
    params = {}
    key, sub = jax.random.split(key)
    params["embedding"] = jax.random.normal(sub, (input_dim, emb_dim), jnp.float32) * 0.1
    for l in range(n_layers):
        d_in = emb_dim if l == 0 else hid_dim
        key, k1, k2, k3, k4 = jax.random.split(key, 5)
        params[f"w_ih_{l}"] = jax.random.uniform(k1, (d_in, 4 * hid_dim), jnp.float32, -k, k)
        params[f"w_hh_{l}"] = jax.random.uniform(k2, (hid_dim, 4 * hid_dim), jnp.float32, -k, k)
        b_ih = jax.random.uniform(k3, (4 * hid_dim,), jnp.float32, -k, k)
        b_hh = jax.random.uniform(k4, (4 * hid_dim,), jnp.float32, -k, k)
        params[f"b_{l}"] = (b_ih + b_hh).reshape(1, 4 * hid_dim)
    return params


def encoder_forward(params, src, n_layers):
    """src: (T, B) int32. Returns (hidden, cell) each (n_layers, B, H)."""
    T, B = src.shape
    E = params["embedding"].shape[1]
    H = params["w_hh_0"].shape[0]
    Bp = max(8, ((B + 7) // 8) * 8)          # pad batch to a sublane multiple for the MXU

    # Embedding gather (glue, plain JAX).
    x = params["embedding"][src]              # (T, B, E)
    # TODO(synk): nn.Dropout is identity in eval/inference; stochastic training dropout not modeled.
    x = jnp.pad(x, ((0, 0), (0, Bp - B), (0, 0)))   # (T, Bp, E); padded rows are independent

    # Reorder gate columns (i, f, g, o) -> (i, f, o, g) so the kernel does 1 sigmoid + 1 tanh.
    def reord(w):
        i, f, g, o = (w[..., 0 * H:1 * H], w[..., 1 * H:2 * H],
                      w[..., 2 * H:3 * H], w[..., 3 * H:4 * H])
        return jnp.concatenate([i, f, o, g], axis=-1)

    # Hoist the layer-0 input projection out of the recurrence: one big batched matmul.
    gx0 = (jnp.dot(x.reshape(T * Bp, E), reord(params["w_ih_0"]),
                   preferred_element_type=jnp.float32)
           + reord(params["b_0"]))            # (T*Bp, 4H)

    layer_weights = [(reord(params["w_hh_0"]),)]
    for l in range(1, n_layers):
        layer_weights.append((reord(params[f"w_ih_{l}"]),
                              reord(params[f"w_hh_{l}"]),
                              reord(params[f"b_{l}"])))

    h_n, c_n = _multilayer_lstm_pallas(gx0, layer_weights, T, Bp, H)
    return h_n[:, :B, :], c_n[:, :B, :]


# ----------------------------- Pure-JAX reference (PyTorch layout) ----------------------------- #

def _lstm_layer_ref(x, w_ih, w_hh, b):
    T, B, _ = x.shape
    H = w_hh.shape[0]

    def step(carry, x_t):
        h, c = carry
        gates = x_t @ w_ih + h @ w_hh + b
        i_g = jax.nn.sigmoid(gates[:, 0 * H:1 * H])
        f_g = jax.nn.sigmoid(gates[:, 1 * H:2 * H])
        g_g = jnp.tanh(gates[:, 2 * H:3 * H])
        o_g = jax.nn.sigmoid(gates[:, 3 * H:4 * H])
        c_new = f_g * c + i_g * g_g
        h_new = o_g * jnp.tanh(c_new)
        return (h_new, c_new), h_new

    init = (jnp.zeros((B, H), jnp.float32), jnp.zeros((B, H), jnp.float32))
    (h_n, c_n), y = lax.scan(step, init, x)
    return y, h_n, c_n


def encoder_forward_ref(params, src, n_layers):
    x = params["embedding"][src]
    hs, cs = [], []
    for l in range(n_layers):
        y, h_n, c_n = _lstm_layer_ref(x, params[f"w_ih_{l}"],
                                      params[f"w_hh_{l}"], params[f"b_{l}"])
        x = y
        hs.append(h_n)
        cs.append(c_n)
    return jnp.stack(hs, axis=0), jnp.stack(cs, axis=0)


# ----------------------------- Main ----------------------------- #

if __name__ == "__main__":
    INPUT_DIM = 16    # vocab size
    EMB_DIM = 32
    HID_DIM = 32
    N_LAYERS = 2
    DROPOUT = 0.1     # identity in eval
    T, B = 8, 2

    key = jax.random.PRNGKey(0)
    key, pkey, skey = jax.random.split(key, 3)
    params = init_encoder_params(pkey, INPUT_DIM, EMB_DIM, HID_DIM, N_LAYERS)
    src = jax.random.randint(skey, (T, B), 0, INPUT_DIM, dtype=jnp.int32)

    fwd = jax.jit(functools.partial(encoder_forward, n_layers=N_LAYERS))
    hidden, cell = fwd(params, src)
    jax.block_until_ready((hidden, cell))

    # Sanity check against a pure-JAX lax.scan reference (original PyTorch gate layout).
    hidden_ref, cell_ref = encoder_forward_ref(params, src, N_LAYERS)
    assert hidden.shape == (N_LAYERS, B, HID_DIM) and cell.shape == (N_LAYERS, B, HID_DIM)
    np.testing.assert_allclose(np.asarray(hidden), np.asarray(hidden_ref), atol=5e-3, rtol=5e-3)
    np.testing.assert_allclose(np.asarray(cell), np.asarray(cell_ref), atol=5e-3, rtol=5e-3)

    print("KERNEL_OK")
</pallas_src>

<mosaic_0001>
module attributes {stable_mosaic.version = 11 : i64} {
  func.func @kernel(%arg0: i32, %arg1: memref<64x128xf32, #tpu.memory_space<vmem>>, %arg2: memref<32x128xf32, #tpu.memory_space<vmem>>, %arg3: memref<32x128xf32, #tpu.memory_space<vmem>>, %arg4: memref<32x128xf32, #tpu.memory_space<vmem>>, %arg5: memref<1x128xf32, #tpu.memory_space<vmem>>, %arg6: memref<2x8x32xf32, #tpu.memory_space<vmem>>, %arg7: memref<2x8x32xf32, #tpu.memory_space<vmem>>, %arg8: memref<64x32xf32, #tpu.memory_space<vmem>>, %arg9: memref<64x128xf32, #tpu.memory_space<vmem>>) attributes {dimension_semantics = [#tpu.dimension_semantics<arbitrary>], iteration_bounds = array<i64: 1>, scalar_prefetch = 0 : i64, scratch_operands = 2 : i64, tpu.core_type = #tpu.core_type<tc>, window_params = [{pipeline_mode = #tpu.pipeline_mode<synchronous>, transform_indices = @transform_0, window_bounds = array<i64: 64, 128>}, {pipeline_mode = #tpu.pipeline_mode<synchronous>, transform_indices = @transform_1, window_bounds = array<i64: 32, 128>}, {pipeline_mode = #tpu.pipeline_mode<synchronous>, transform_indices = @transform_2, window_bounds = array<i64: 32, 128>}, {pipeline_mode = #tpu.pipeline_mode<synchronous>, transform_indices = @transform_3, window_bounds = array<i64: 32, 128>}, {pipeline_mode = #tpu.pipeline_mode<synchronous>, transform_indices = @transform_4, window_bounds = array<i64: 1, 128>}, {pipeline_mode = #tpu.pipeline_mode<synchronous>, transform_indices = @transform_5, window_bounds = array<i64: 2, 8, 32>}, {pipeline_mode = #tpu.pipeline_mode<synchronous>, transform_indices = @transform_6, window_bounds = array<i64: 2, 8, 32>}]} {
    %c0 = arith.constant 0 : index
    %c0_0 = arith.constant 0 : index
    %0 = vector.load %arg2[%c0, %c0_0] : memref<32x128xf32, #tpu.memory_space<vmem>>, vector<32x128xf32>
    %cst = arith.constant 0.000000e+00 : f32
    %1 = vector.broadcast %cst : f32 to vector<8x32xf32>
    %cst_1 = arith.constant 0.000000e+00 : f32
    %2 = vector.broadcast %cst_1 : f32 to vector<8x32xf32>
    %c0_i32 = arith.constant 0 : i32
    %c8_i32 = arith.constant 8 : i32
    %3 = arith.muli %c0_i32, %c8_i32 : i32
    %4 = tpu.assume_multiple %3, 8 : i32
    %5 = arith.index_cast %4 : i32 to index
    %c0_2 = arith.constant 0 : index
    %6 = vector.load %arg1[%5, %c0_2] : memref<64x128xf32, #tpu.memory_space<vmem>>, vector<8x128xf32>
    %cst_3 = arith.constant dense<0.000000e+00> : vector<8x128xf32>
    %7 = tpu.matmul %1, %0, %cst_3 {dimension_numbers = #tpu.dot_dimension_numbers<[1], [0], [0], [1], [0, 0, 1, 1], [], []>} : vector<8x32xf32>, vector<32x128xf32>, vector<8x128xf32> -> vector<8x128xf32>
    %8 = arith.addf %6, %7 : vector<8x128xf32>
    %9 = vector.extract_strided_slice %8 {offsets = [0, 0], sizes = [8, 96], strides = [1, 1]} : vector<8x128xf32> to vector<8x96xf32>
    %10 = arith.negf %9 : vector<8x96xf32>
    %11 = math.exp %10 : vector<8x96xf32>
    %cst_4 = arith.constant 1.000000e+00 : f32
    %12 = vector.broadcast %cst_4 : f32 to vector<8x96xf32>
    %13 = arith.addf %12, %11 : vector<8x96xf32>
    %14 = arith.divf %12, %13 : vector<8x96xf32>
    %15 = vector.extract_strided_slice %14 {offsets = [0, 0], sizes = [8, 32], strides = [1, 1]} : vector<8x96xf32> to vector<8x32xf32>
    %16 = vector.extract_strided_slice %14 {offsets = [0, 32], sizes = [8, 32], strides = [1, 1]} : vector<8x96xf32> to vector<8x32xf32>
    %17 = vector.extract_strided_slice %14 {offsets = [0, 64], sizes = [8, 32], strides = [1, 1]} : vector<8x96xf32> to vector<8x32xf32>
    %18 = vector.extract_strided_slice %8 {offsets = [0, 96], sizes = [8, 32], strides = [1, 1]} : vector<8x128xf32> to vector<8x32xf32>
    %19 = math.tanh %18 : vector<8x32xf32>
    %20 = arith.mulf %16, %2 : vector<8x32xf32>
    %21 = arith.mulf %15, %19 : vector<8x32xf32>
    %22 = arith.addf %20, %21 : vector<8x32xf32>
    %23 = math.tanh %22 : vector<8x32xf32>
    %24 = arith.mulf %17, %23 : vector<8x32xf32>
    %25 = arith.index_cast %4 : i32 to index
    %c0_5 = arith.constant 0 : index
    %26 = vector.load %arg8[%25, %c0_5] : memref<64x32xf32, #tpu.memory_space<vmem>>, vector<8x32xf32>
    tpu.vector_store %arg8[%25, %c0_5], %24 {strides = array<i32>} : memref<64x32xf32, #tpu.memory_space<vmem>>, vector<8x32xf32>,
    %c1_i32 = arith.constant 1 : i32
    %c8_i32_6 = arith.constant 8 : i32
    %27 = arith.muli %c1_i32, %c8_i32_6 : i32
    %28 = tpu.assume_multiple %27, 8 : i32
    %29 = arith.index_cast %28 : i32 to index
    %c0_7 = arith.constant 0 : index
    %30 = vector.load %arg1[%29, %c0_7] : memref<64x128xf32, #tpu.memory_space<vmem>>, vector<8x128xf32>
    %cst_8 = arith.constant dense<0.000000e+00> : vector<8x128xf32>
    %31 = tpu.matmul %24, %0, %cst_8 {dimension_numbers = #tpu.dot_dimension_numbers<[1], [0], [0], [1], [0, 0, 1, 1], [], []>} : vector<8x32xf32>, vector<32x128xf32>, vector<8x128xf32> -> vector<8x128xf32>
    %32 = arith.addf %30, %31 : vector<8x128xf32>
    %33 = vector.extract_strided_slice %32 {offsets = [0, 0], sizes = [8, 96], strides = [1, 1]} : vector<8x128xf32> to vector<8x96xf32>
    %34 = arith.negf %33 : vector<8x96xf32>
    %35 = math.exp %34 : vector<8x96xf32>
    %cst_9 = arith.constant 1.000000e+00 : f32
    %36 = vector.broadcast %cst_9 : f32 to vector<8x96xf32>
    %37 = arith.addf %36, %35 : vector<8x96xf32>
    %38 = arith.divf %36, %37 : vector<8x96xf32>
    %39 = vector.extract_strided_slice %38 {offsets = [0, 0], sizes = [8, 32], strides = [1, 1]} : vector<8x96xf32> to vector<8x32xf32>
    %40 = vector.extract_strided_slice %38 {offsets = [0, 32], sizes = [8, 32], strides = [1, 1]} : vector<8x96xf32> to vector<8x32xf32>
    %41 = vector.extract_strided_slice %38 {offsets = [0, 64], sizes = [8, 32], strides = [1, 1]} : vector<8x96xf32> to vector<8x32xf32>
    %42 = vector.extract_strided_slice %32 {offsets = [0, 96], sizes = [8, 32], strides = [1, 1]} : vector<8x128xf32> to vector<8x32xf32>
    %43 = math.tanh %42 : vector<8x32xf32>
    %44 = arith.mulf %40, %22 : vector<8x32xf32>
    %45 = arith.mulf %39, %43 : vector<8x32xf32>
    %46 = arith.addf %44, %45 : vector<8x32xf32>
    %47 = math.tanh %46 : vector<8x32xf32>
    %48 = arith.mulf %41, %47 : vector<8x32xf32>
    %49 = arith.index_cast %28 : i32 to index
    %c0_10 = arith.constant 0 : index
    %50 = vector.load %arg8[%49, %c0_10] : memref<64x32xf32, #tpu.memory_space<vmem>>, vector<8x32xf32>
    tpu.vector_store %arg8[%49, %c0_10], %48 {strides = array<i32>} : memref<64x32xf32, #tpu.memory_space<vmem>>, vector<8x32xf32>,
    %c2_i32 = arith.constant 2 : i32
    %c8_i32_11 = arith.constant 8 : i32
    %51 = arith.muli %c2_i32, %c8_i32_11 : i32
    %52 = tpu.assume_multiple %51, 8 : i32
    %53 = arith.index_cast %52 : i32 to index
    %c0_12 = arith.constant 0 : index
    %54 = vector.load %arg1[%53, %c0_12] : memref<64x128xf32, #tpu.memory_space<vmem>>, vector<8x128xf32>
    %cst_13 = arith.constant dense<0.000000e+00> : vector<8x128xf32>
    %55 = tpu.matmul %48, %0, %cst_13 {dimension_numbers = #tpu.dot_dimension_numbers<[1], [0], [0], [1], [0, 0, 1, 1], [], []>} : vector<8x32xf32>, vector<32x128xf32>, vector<8x128xf32> -> vector<8x128xf32>
    %56 = arith.addf %54, %55 : vector<8x128xf32>
    %57 = vector.extract_strided_slice %56 {offsets = [0, 0], sizes = [8, 96], strides = [1, 1]} : vector<8x128xf32> to vector<8x96xf32>
    %58 = arith.negf %57 : vector<8x96xf32>
    %59 = math.exp %58 : vector<8x96xf32>
    %cst_14 = arith.constant 1.000000e+00 : f32
    %60 = vector.broadcast %cst_14 : f32 to vector<8x96xf32>
    %61 = arith.addf %60, %59 : vector<8x96xf32>
    %62 = arith.divf %60, %61 : vector<8x96xf32>
    %63 = vector.extract_strided_slice %62 {offsets = [0, 0], sizes = [8, 32], strides = [1, 1]} : vector<8x96xf32> to vector<8x32xf32>
    %64 = vector.extract_strided_slice %62 {offsets = [0, 32], sizes = [8, 32], strides = [1, 1]} : vector<8x96xf32> to vector<8x32xf32>
    %65 = vector.extract_strided_slice %62 {offsets = [0, 64], sizes = [8, 32], strides = [1, 1]} : vector<8x96xf32> to vector<8x32xf32>
    %66 = vector.extract_strided_slice %56 {offsets = [0, 96], sizes = [8, 32], strides = [1, 1]} : vector<8x128xf32> to vector<8x32xf32>
    %67 = math.tanh %66 : vector<8x32xf32>
    %68 = arith.mulf %64, %46 : vector<8x32xf32>
    %69 = arith.mulf %63, %67 : vector<8x32xf32>
    %70 = arith.addf %68, %69 : vector<8x32xf32>
    %71 = math.tanh %70 : vector<8x32xf32>
    %72 = arith.mulf %65, %71 : vector<8x32xf32>
    %73 = arith.index_cast %52 : i32 to index
    %c0_15 = arith.constant 0 : index
    %74 = vector.load %arg8[%73, %c0_15] : memref<64x32xf32, #tpu.memory_space<vmem>>, vector<8x32xf32>
    tpu.vector_store %arg8[%73, %c0_15], %72 {strides = array<i32>} : memref<64x32xf32, #tpu.memory_space<vmem>>, vector<8x32xf32>,
    %c3_i32 = arith.constant 3 : i32
    %c8_i32_16 = arith.constant 8 : i32
    %75 = arith.muli %c3_i32, %c8_i32_16 : i32
    %76 = tpu.assume_multiple %75, 8 : i32
    %77 = arith.index_cast %76 : i32 to index
    %c0_17 = arith.constant 0 : index
    %78 = vector.load %arg1[%77, %c0_17] : memref<64x128xf32, #tpu.memory_space<vmem>>, vector<8x128xf32>
    %cst_18 = arith.constant dense<0.000000e+00> : vector<8x128xf32>
    %79 = tpu.matmul %72, %0, %cst_18 {dimension_numbers = #tpu.dot_dimension_numbers<[1], [0], [0], [1], [0, 0, 1, 1], [], []>} : vector<8x32xf32>, vector<32x128xf32>, vector<8x128xf32> -> vector<8x128xf32>
    %80 = arith.addf %78, %79 : vector<8x128xf32>
    %81 = vector.extract_strided_slice %80 {offsets = [0, 0], sizes = [8, 96], strides = [1, 1]} : vector<8x128xf32> to vector<8x96xf32>
    %82 = arith.negf %81 : vector<8x96xf32>
    %83 = math.exp %82 : vector<8x96xf32>
    %cst_19 = arith.constant 1.000000e+00 : f32
    %84 = vector.broadcast %cst_19 : f32 to vector<8x96xf32>
    %85 = arith.addf %84, %83 : vector<8x96xf32>
    %86 = arith.divf %84, %85 : vector<8x96xf32>
    %87 = vector.extract_strided_slice %86 {offsets = [0, 0], sizes = [8, 32], strides = [1, 1]} : vector<8x96xf32> to vector<8x32xf32>
    %88 = vector.extract_strided_slice %86 {offsets = [0, 32], sizes = [8, 32], strides = [1, 1]} : vector<8x96xf32> to vector<8x32xf32>
    %89 = vector.extract_strided_slice %86 {offsets = [0, 64], sizes = [8, 32], strides = [1, 1]} : vector<8x96xf32> to vector<8x32xf32>
    %90 = vector.extract_strided_slice %80 {offsets = [0, 96], sizes = [8, 32], strides = [1, 1]} : vector<8x128xf32> to vector<8x32xf32>
    %91 = math.tanh %90 : vector<8x32xf32>
    %92 = arith.mulf %88, %70 : vector<8x32xf32>
    %93 = arith.mulf %87, %91 : vector<8x32xf32>
    %94 = arith.addf %92, %93 : vector<8x32xf32>
    %95 = math.tanh %94 : vector<8x32xf32>
    %96 = arith.mulf %89, %95 : vector<8x32xf32>
    %97 = arith.index_cast %76 : i32 to index
    %c0_20 = arith.constant 0 : index
    %98 = vector.load %arg8[%97, %c0_20] : memref<64x32xf32, #tpu.memory_space<vmem>>, vector<8x32xf32>
    tpu.vector_store %arg8[%97, %c0_20], %96 {strides = array<i32>} : memref<64x32xf32, #tpu.memory_space<vmem>>, vector<8x32xf32>,
    %c4_i32 = arith.constant 4 : i32
    %c8_i32_21 = arith.constant 8 : i32
    %99 = arith.muli %c4_i32, %c8_i32_21 : i32
    %100 = tpu.assume_multiple %99, 8 : i32
    %101 = arith.index_cast %100 : i32 to index
    %c0_22 = arith.constant 0 : index
    %102 = vector.load %arg1[%101, %c0_22] : memref<64x128xf32, #tpu.memory_space<vmem>>, vector<8x128xf32>
    %cst_23 = arith.constant dense<0.000000e+00> : vector<8x128xf32>
    %103 = tpu.matmul %96, %0, %cst_23 {dimension_numbers = #tpu.dot_dimension_numbers<[1], [0], [0], [1], [0, 0, 1, 1], [], []>} : vector<8x32xf32>, vector<32x128xf32>, vector<8x128xf32> -> vector<8x128xf32>
    %104 = arith.addf %102, %103 : vector<8x128xf32>
    %105 = vector.extract_strided_slice %104 {offsets = [0, 0], sizes = [8, 96], strides = [1, 1]} : vector<8x128xf32> to vector<8x96xf32>
    %106 = arith.negf %105 : vector<8x96xf32>
    %107 = math.exp %106 : vector<8x96xf32>
    %cst_24 = arith.constant 1.000000e+00 : f32
    %108 = vector.broadcast %cst_24 : f32 to vector<8x96xf32>
    %109 = arith.addf %108, %107 : vector<8x96xf32>
    %110 = arith.divf %108, %109 : vector<8x96xf32>
    %111 = vector.extract_strided_slice %110 {offsets = [0, 0], sizes = [8, 32], strides = [1, 1]} : vector<8x96xf32> to vector<8x32xf32>
    %112 = vector.extract_strided_slice %110 {offsets = [0, 32], sizes = [8, 32], strides = [1, 1]} : vector<8x96xf32> to vector<8x32xf32>
    %113 = vector.extract_strided_slice %110 {offsets = [0, 64], sizes = [8, 32], strides = [1, 1]} : vector<8x96xf32> to vector<8x32xf32>
    %114 = vector.extract_strided_slice %104 {offsets = [0, 96], sizes = [8, 32], strides = [1, 1]} : vector<8x128xf32> to vector<8x32xf32>
    %115 = math.tanh %114 : vector<8x32xf32>
    %116 = arith.mulf %112, %94 : vector<8x32xf32>
    %117 = arith.mulf %111, %115 : vector<8x32xf32>
    %118 = arith.addf %116, %117 : vector<8x32xf32>
    %119 = math.tanh %118 : vector<8x32xf32>
    %120 = arith.mulf %113, %119 : vector<8x32xf32>
    %121 = arith.index_cast %100 : i32 to index
    %c0_25 = arith.constant 0 : index
    %122 = vector.load %arg8[%121, %c0_25] : memref<64x32xf32, #tpu.memory_space<vmem>>, vector<8x32xf32>
    tpu.vector_store %arg8[%121, %c0_25], %120 {strides = array<i32>} : memref<64x32xf32, #tpu.memory_space<vmem>>, vector<8x32xf32>,
    %c5_i32 = arith.constant 5 : i32
    %c8_i32_26 = arith.constant 8 : i32
    %123 = arith.muli %c5_i32, %c8_i32_26 : i32
    %124 = tpu.assume_multiple %123, 8 : i32
    %125 = arith.index_cast %124 : i32 to index
    %c0_27 = arith.constant 0 : index
    %126 = vector.load %arg1[%125, %c0_27] : memref<64x128xf32, #tpu.memory_space<vmem>>, vector<8x128xf32>
    %cst_28 = arith.constant dense<0.000000e+00> : vector<8x128xf32>
    %127 = tpu.matmul %120, %0, %cst_28 {dimension_numbers = #tpu.dot_dimension_numbers<[1], [0], [0], [1], [0, 0, 1, 1], [], []>} : vector<8x32xf32>, vector<32x128xf32>, vector<8x128xf32> -> vector<8x128xf32>
    %128 = arith.addf %126, %127 : vector<8x128xf32>
    %129 = vector.extract_strided_slice %128 {offsets = [0, 0], sizes = [8, 96], strides = [1, 1]} : vector<8x128xf32> to vector<8x96xf32>
    %130 = arith.negf %129 : vector<8x96xf32>
    %131 = math.exp %130 : vector<8x96xf32>
    %cst_29 = arith.constant 1.000000e+00 : f32
    %132 = vector.broadcast %cst_29 : f32 to vector<8x96xf32>
    %133 = arith.addf %132, %131 : vector<8x96xf32>
    %134 = arith.divf %132, %133 : vector<8x96xf32>
    %135 = vector.extract_strided_slice %134 {offsets = [0, 0], sizes = [8, 32], strides = [1, 1]} : vector<8x96xf32> to vector<8x32xf32>
    %136 = vector.extract_strided_slice %134 {offsets = [0, 32], sizes = [8, 32], strides = [1, 1]} : vector<8x96xf32> to vector<8x32xf32>
    %137 = vector.extract_strided_slice %134 {offsets = [0, 64], sizes = [8, 32], strides = [1, 1]} : vector<8x96xf32> to vector<8x32xf32>
    %138 = vector.extract_strided_slice %128 {offsets = [0, 96], sizes = [8, 32], strides = [1, 1]} : vector<8x128xf32> to vector<8x32xf32>
    %139 = math.tanh %138 : vector<8x32xf32>
    %140 = arith.mulf %136, %118 : vector<8x32xf32>
    %141 = arith.mulf %135, %139 : vector<8x32xf32>
    %142 = arith.addf %140, %141 : vector<8x32xf32>
    %143 = math.tanh %142 : vector<8x32xf32>
    %144 = arith.mulf %137, %143 : vector<8x32xf32>
    %145 = arith.index_cast %124 : i32 to index
    %c0_30 = arith.constant 0 : index
    %146 = vector.load %arg8[%145, %c0_30] : memref<64x32xf32, #tpu.memory_space<vmem>>, vector<8x32xf32>
    tpu.vector_store %arg8[%145, %c0_30], %144 {strides = array<i32>} : memref<64x32xf32, #tpu.memory_space<vmem>>, vector<8x32xf32>,
    %c6_i32 = arith.constant 6 : i32
    %c8_i32_31 = arith.constant 8 : i32
    %147 = arith.muli %c6_i32, %c8_i32_31 : i32
    %148 = tpu.assume_multiple %147, 8 : i32
    %149 = arith.index_cast %148 : i32 to index
    %c0_32 = arith.constant 0 : index
    %150 = vector.load %arg1[%149, %c0_32] : memref<64x128xf32, #tpu.memory_space<vmem>>, vector<8x128xf32>
    %cst_33 = arith.constant dense<0.000000e+00> : vector<8x128xf32>
    %151 = tpu.matmul %144, %0, %cst_33 {dimension_numbers = #tpu.dot_dimension_numbers<[1], [0], [0], [1], [0, 0, 1, 1], [], []>} : vector<8x32xf32>, vector<32x128xf32>, vector<8x128xf32> -> vector<8x128xf32>
    %152 = arith.addf %150, %151 : vector<8x128xf32>
    %153 = vector.extract_strided_slice %152 {offsets = [0, 0], sizes = [8, 96], strides = [1, 1]} : vector<8x128xf32> to vector<8x96xf32>
    %154 = arith.negf %153 : vector<8x96xf32>
    %155 = math.exp %154 : vector<8x96xf32>
    %cst_34 = arith.constant 1.000000e+00 : f32
    %156 = vector.broadcast %cst_34 : f32 to vector<8x96xf32>
    %157 = arith.addf %156, %155 : vector<8x96xf32>
    %158 = arith.divf %156, %157 : vector<8x96xf32>
    %159 = vector.extract_strided_slice %158 {offsets = [0, 0], sizes = [8, 32], strides = [1, 1]} : vector<8x96xf32> to vector<8x32xf32>
    %160 = vector.extract_strided_slice %158 {offsets = [0, 32], sizes = [8, 32], strides = [1, 1]} : vector<8x96xf32> to vector<8x32xf32>
    %161 = vector.extract_strided_slice %158 {offsets = [0, 64], sizes = [8, 32], strides = [1, 1]} : vector<8x96xf32> to vector<8x32xf32>
    %162 = vector.extract_strided_slice %152 {offsets = [0, 96], sizes = [8, 32], strides = [1, 1]} : vector<8x128xf32> to vector<8x32xf32>
    %163 = math.tanh %162 : vector<8x32xf32>
    %164 = arith.mulf %160, %142 : vector<8x32xf32>
    %165 = arith.mulf %159, %163 : vector<8x32xf32>
    %166 = arith.addf %164, %165 : vector<8x32xf32>
    %167 = math.tanh %166 : vector<8x32xf32>
    %168 = arith.mulf %161, %167 : vector<8x32xf32>
    %169 = arith.index_cast %148 : i32 to index
    %c0_35 = arith.constant 0 : index
    %170 = vector.load %arg8[%169, %c0_35] : memref<64x32xf32, #tpu.memory_space<vmem>>, vector<8x32xf32>
    tpu.vector_store %arg8[%169, %c0_35], %168 {strides = array<i32>} : memref<64x32xf32, #tpu.memory_space<vmem>>, vector<8x32xf32>,
    %c7_i32 = arith.constant 7 : i32
    %c8_i32_36 = arith.constant 8 : i32
    %171 = arith.muli %c7_i32, %c8_i32_36 : i32
    %172 = tpu.assume_multiple %171, 8 : i32
    %173 = arith.index_cast %172 : i32 to index
    %c0_37 = arith.constant 0 : index
    %174 = vector.load %arg1[%173, %c0_37] : memref<64x128xf32, #tpu.memory_space<vmem>>, vector<8x128xf32>
    %cst_38 = arith.constant dense<0.000000e+00> : vector<8x128xf32>
    %175 = tpu.matmul %168, %0, %cst_38 {dimension_numbers = #tpu.dot_dimension_numbers<[1], [0], [0], [1], [0, 0, 1, 1], [], []>} : vector<8x32xf32>, vector<32x128xf32>, vector<8x128xf32> -> vector<8x128xf32>
    %176 = arith.addf %174, %175 : vector<8x128xf32>
    %177 = vector.extract_strided_slice %176 {offsets = [0, 0], sizes = [8, 96], strides = [1, 1]} : vector<8x128xf32> to vector<8x96xf32>
    %178 = arith.negf %177 : vector<8x96xf32>
    %179 = math.exp %178 : vector<8x96xf32>
    %cst_39 = arith.constant 1.000000e+00 : f32
    %180 = vector.broadcast %cst_39 : f32 to vector<8x96xf32>
    %181 = arith.addf %180, %179 : vector<8x96xf32>
    %182 = arith.divf %180, %181 : vector<8x96xf32>
    %183 = vector.extract_strided_slice %182 {offsets = [0, 0], sizes = [8, 32], strides = [1, 1]} : vector<8x96xf32> to vector<8x32xf32>
    %184 = vector.extract_strided_slice %182 {offsets = [0, 32], sizes = [8, 32], strides = [1, 1]} : vector<8x96xf32> to vector<8x32xf32>
    %185 = vector.extract_strided_slice %182 {offsets = [0, 64], sizes = [8, 32], strides = [1, 1]} : vector<8x96xf32> to vector<8x32xf32>
    %186 = vector.extract_strided_slice %176 {offsets = [0, 96], sizes = [8, 32], strides = [1, 1]} : vector<8x128xf32> to vector<8x32xf32>
    %187 = math.tanh %186 : vector<8x32xf32>
    %188 = arith.mulf %184, %166 : vector<8x32xf32>
    %189 = arith.mulf %183, %187 : vector<8x32xf32>
    %190 = arith.addf %188, %189 : vector<8x32xf32>
    %191 = math.tanh %190 : vector<8x32xf32>
    %192 = arith.mulf %185, %191 : vector<8x32xf32>
    %193 = arith.index_cast %172 : i32 to index
    %c0_40 = arith.constant 0 : index
    %194 = vector.load %arg8[%193, %c0_40] : memref<64x32xf32, #tpu.memory_space<vmem>>, vector<8x32xf32>
    tpu.vector_store %arg8[%193, %c0_40], %192 {strides = array<i32>} : memref<64x32xf32, #tpu.memory_space<vmem>>, vector<8x32xf32>,
    %c8_i32_41 = arith.constant 8 : i32
    %c0_42 = arith.constant 0 : index
    %c0_43 = arith.constant 0 : index
    %c0_44 = arith.constant 0 : index
    %195 = vector.load %arg6[%c0_42, %c0_43, %c0_44] : memref<2x8x32xf32, #tpu.memory_space<vmem>>, vector<1x8x32xf32>
    %196 = vector.shape_cast %195 : vector<1x8x32xf32> to vector<8x32xf32>
    %197 = vector.shape_cast %192 : vector<8x32xf32> to vector<1x8x32xf32>
    tpu.vector_store %arg6[%c0_42, %c0_43, %c0_44], %197 {strides = array<i32>} : memref<2x8x32xf32, #tpu.memory_space<vmem>>, vector<1x8x32xf32>,
    %c0_45 = arith.constant 0 : index
    %c0_46 = arith.constant 0 : index
    %c0_47 = arith.constant 0 : index
    %198 = vector.load %arg7[%c0_45, %c0_46, %c0_47] : memref<2x8x32xf32, #tpu.memory_space<vmem>>, vector<1x8x32xf32>
    %199 = vector.shape_cast %198 : vector<1x8x32xf32> to vector<8x32xf32>
    %200 = vector.shape_cast %190 : vector<8x32xf32> to vector<1x8x32xf32>
    tpu.vector_store %arg7[%c0_45, %c0_46, %c0_47], %200 {strides = array<i32>} : memref<2x8x32xf32, #tpu.memory_space<vmem>>, vector<1x8x32xf32>,
    %c0_48 = arith.constant 0 : index
    %c0_49 = arith.constant 0 : index
    %201 = vector.load %arg8[%c0_48, %c0_49] : memref<64x32xf32, #tpu.memory_space<vmem>>, vector<64x32xf32>
    %c0_50 = arith.constant 0 : index
    %c0_51 = arith.constant 0 : index
    %202 = vector.load %arg3[%c0_50, %c0_51] : memref<32x128xf32, #tpu.memory_space<vmem>>, vector<32x128xf32>
    %cst_52 = arith.constant dense<0.000000e+00> : vector<64x128xf32>
    %203 = tpu.matmul %201, %202, %cst_52 {dimension_numbers = #tpu.dot_dimension_numbers<[1], [0], [0], [1], [0, 0, 1, 1], [], []>} : vector<64x32xf32>, vector<32x128xf32>, vector<64x128xf32> -> vector<64x128xf32>
    %c0_53 = arith.constant 0 : index
    %c0_54 = arith.constant 0 : index
    %204 = vector.load %arg5[%c0_53, %c0_54] : memref<1x128xf32, #tpu.memory_space<vmem>>, vector<1x128xf32>
    %205 = vector.broadcast %204 : vector<1x128xf32> to vector<64x128xf32>
    %206 = arith.addf %203, %205 : vector<64x128xf32>
    %c0_55 = arith.constant 0 : index
    %c0_56 = arith.constant 0 : index
    %207 = vector.load %arg9[%c0_55, %c0_56] : memref<64x128xf32, #tpu.memory_space<vmem>>, vector<64x128xf32>
    tpu.vector_store %arg9[%c0_55, %c0_56], %206 {strides = array<i32>} : memref<64x128xf32, #tpu.memory_space<vmem>>, vector<64x128xf32>,
    %c0_57 = arith.constant 0 : index
    %c0_58 = arith.constant 0 : index
    %208 = vector.load %arg4[%c0_57, %c0_58] : memref<32x128xf32, #tpu.memory_space<vmem>>, vector<32x128xf32>
    %cst_59 = arith.constant 0.000000e+00 : f32
    %209 = vector.broadcast %cst_59 : f32 to vector<8x32xf32>
    %cst_60 = arith.constant 0.000000e+00 : f32
    %210 = vector.broadcast %cst_60 : f32 to vector<8x32xf32>
    %c0_i32_61 = arith.constant 0 : i32
    %c8_i32_62 = arith.constant 8 : i32
    %211 = arith.muli %c0_i32_61, %c8_i32_62 : i32
    %212 = tpu.assume_multiple %211, 8 : i32
    %213 = arith.index_cast %212 : i32 to index
    %c0_63 = arith.constant 0 : index
    %214 = vector.load %arg9[%213, %c0_63] : memref<64x128xf32, #tpu.memory_space<vmem>>, vector<8x128xf32>
    %cst_64 = arith.constant dense<0.000000e+00> : vector<8x128xf32>
    %215 = tpu.matmul %209, %208, %cst_64 {dimension_numbers = #tpu.dot_dimension_numbers<[1], [0], [0], [1], [0, 0, 1, 1], [], []>} : vector<8x32xf32>, vector<32x128xf32>, vector<8x128xf32> -> vector<8x128xf32>
    %216 = arith.addf %214, %215 : vector<8x128xf32>
    %217 = vector.extract_strided_slice %216 {offsets = [0, 0], sizes = [8, 96], strides = [1, 1]} : vector<8x128xf32> to vector<8x96xf32>
    %218 = arith.negf %217 : vector<8x96xf32>
    %219 = math.exp %218 : vector<8x96xf32>
    %cst_65 = arith.constant 1.000000e+00 : f32
    %220 = vector.broadcast %cst_65 : f32 to vector<8x96xf32>
    %221 = arith.addf %220, %219 : vector<8x96xf32>
    %222 = arith.divf %220, %221 : vector<8x96xf32>
    %223 = vector.extract_strided_slice %222 {offsets = [0, 0], sizes = [8, 32], strides = [1, 1]} : vector<8x96xf32> to vector<8x32xf32>
    %224 = vector.extract_strided_slice %222 {offsets = [0, 32], sizes = [8, 32], strides = [1, 1]} : vector<8x96xf32> to vector<8x32xf32>
    %225 = vector.extract_strided_slice %222 {offsets = [0, 64], sizes = [8, 32], strides = [1, 1]} : vector<8x96xf32> to vector<8x32xf32>
    %226 = vector.extract_strided_slice %216 {offsets = [0, 96], sizes = [8, 32], strides = [1, 1]} : vector<8x128xf32> to vector<8x32xf32>
    %227 = math.tanh %226 : vector<8x32xf32>
    %228 = arith.mulf %224, %210 : vector<8x32xf32>
    %229 = arith.mulf %223, %227 : vector<8x32xf32>
    %230 = arith.addf %228, %229 : vector<8x32xf32>
    %231 = math.tanh %230 : vector<8x32xf32>
    %232 = arith.mulf %225, %231 : vector<8x32xf32>
    %233 = arith.index_cast %212 : i32 to index
    %c0_66 = arith.constant 0 : index
    %234 = vector.load %arg8[%233, %c0_66] : memref<64x32xf32, #tpu.memory_space<vmem>>, vector<8x32xf32>
    tpu.vector_store %arg8[%233, %c0_66], %232 {strides = array<i32>} : memref<64x32xf32, #tpu.memory_space<vmem>>, vector<8x32xf32>,
    %c1_i32_67 = arith.constant 1 : i32
    %c8_i32_68 = arith.constant 8 : i32
    %235 = arith.muli %c1_i32_67, %c8_i32_68 : i32
    %236 = tpu.assume_multiple %235, 8 : i32
    %237 = arith.index_cast %236 : i32 to index
    %c0_69 = arith.constant 0 : index
    %238 = vector.load %arg9[%237, %c0_69] : memref<64x128xf32, #tpu.memory_space<vmem>>, vector<8x128xf32>
    %cst_70 = arith.constant dense<0.000000e+00> : vector<8x128xf32>
    %239 = tpu.matmul %232, %208, %cst_70 {dimension_numbers = #tpu.dot_dimension_numbers<[1], [0], [0], [1], [0, 0, 1, 1], [], []>} : vector<8x32xf32>, vector<32x128xf32>, vector<8x128xf32> -> vector<8x128xf32>
    %240 = arith.addf %238, %239 : vector<8x128xf32>
    %241 = vector.extract_strided_slice %240 {offsets = [0, 0], sizes = [8, 96], strides = [1, 1]} : vector<8x128xf32> to vector<8x96xf32>
    %242 = arith.negf %241 : vector<8x96xf32>
    %243 = math.exp %242 : vector<8x96xf32>
    %cst_71 = arith.constant 1.000000e+00 : f32
    %244 = vector.broadcast %cst_71 : f32 to vector<8x96xf32>
    %245 = arith.addf %244, %243 : vector<8x96xf32>
    %246 = arith.divf %244, %245 : vector<8x96xf32>
    %247 = vector.extract_strided_slice %246 {offsets = [0, 0], sizes = [8, 32], strides = [1, 1]} : vector<8x96xf32> to vector<8x32xf32>
    %248 = vector.extract_strided_slice %246 {offsets = [0, 32], sizes = [8, 32], strides = [1, 1]} : vector<8x96xf32> to vector<8x32xf32>
    %249 = vector.extract_strided_slice %246 {offsets = [0, 64], sizes = [8, 32], strides = [1, 1]} : vector<8x96xf32> to vector<8x32xf32>
    %250 = vector.extract_strided_slice %240 {offsets = [0, 96], sizes = [8, 32], strides = [1, 1]} : vector<8x128xf32> to vector<8x32xf32>
    %251 = math.tanh %250 : vector<8x32xf32>
    %252 = arith.mulf %248, %230 : vector<8x32xf32>
    %253 = arith.mulf %247, %251 : vector<8x32xf32>
    %254 = arith.addf %252, %253 : vector<8x32xf32>
    %255 = math.tanh %254 : vector<8x32xf32>
    %256 = arith.mulf %249, %255 : vector<8x32xf32>
    %257 = arith.index_cast %236 : i32 to index
    %c0_72 = arith.constant 0 : index
    %258 = vector.load %arg8[%257, %c0_72] : memref<64x32xf32, #tpu.memory_space<vmem>>, vector<8x32xf32>
    tpu.vector_store %arg8[%257, %c0_72], %256 {strides = array<i32>} : memref<64x32xf32, #tpu.memory_space<vmem>>, vector<8x32xf32>,
    %c2_i32_73 = arith.constant 2 : i32
    %c8_i32_74 = arith.constant 8 : i32
    %259 = arith.muli %c2_i32_73, %c8_i32_74 : i32
    %260 = tpu.assume_multiple %259, 8 : i32
    %261 = arith.index_cast %260 : i32 to index
    %c0_75 = arith.constant 0 : index
    %262 = vector.load %arg9[%261, %c0_75] : memref<64x128xf32, #tpu.memory_space<vmem>>, vector<8x128xf32>
    %cst_76 = arith.constant dense<0.000000e+00> : vector<8x128xf32>
    %263 = tpu.matmul %256, %208, %cst_76 {dimension_numbers = #tpu.dot_dimension_numbers<[1], [0], [0], [1], [0, 0, 1, 1], [], []>} : vector<8x32xf32>, vector<32x128xf32>, vector<8x128xf32> -> vector<8x128xf32>
    %264 = arith.addf %262, %263 : vector<8x128xf32>
    %265 = vector.extract_strided_slice %264 {offsets = [0, 0], sizes = [8, 96], strides = [1, 1]} : vector<8x128xf32> to vector<8x96xf32>
    %266 = arith.negf %265 : vector<8x96xf32>
    %267 = math.exp %266 : vector<8x96xf32>
    %cst_77 = arith.constant 1.000000e+00 : f32
    %268 = vector.broadcast %cst_77 : f32 to vector<8x96xf32>
    %269 = arith.addf %268, %267 : vector<8x96xf32>
    %270 = arith.divf %268, %269 : vector<8x96xf32>
    %271 = vector.extract_strided_slice %270 {offsets = [0, 0], sizes = [8, 32], strides = [1, 1]} : vector<8x96xf32> to vector<8x32xf32>
    %272 = vector.extract_strided_slice %270 {offsets = [0, 32], sizes = [8, 32], strides = [1, 1]} : vector<8x96xf32> to vector<8x32xf32>
    %273 = vector.extract_strided_slice %270 {offsets = [0, 64], sizes = [8, 32], strides = [1, 1]} : vector<8x96xf32> to vector<8x32xf32>
    %274 = vector.extract_strided_slice %264 {offsets = [0, 96], sizes = [8, 32], strides = [1, 1]} : vector<8x128xf32> to vector<8x32xf32>
    %275 = math.tanh %274 : vector<8x32xf32>
    %276 = arith.mulf %272, %254 : vector<8x32xf32>
    %277 = arith.mulf %271, %275 : vector<8x32xf32>
    %278 = arith.addf %276, %277 : vector<8x32xf32>
    %279 = math.tanh %278 : vector<8x32xf32>
    %280 = arith.mulf %273, %279 : vector<8x32xf32>
    %281 = arith.index_cast %260 : i32 to index
    %c0_78 = arith.constant 0 : index
    %282 = vector.load %arg8[%281, %c0_78] : memref<64x32xf32, #tpu.memory_space<vmem>>, vector<8x32xf32>
    tpu.vector_store %arg8[%281, %c0_78], %280 {strides = array<i32>} : memref<64x32xf32, #tpu.memory_space<vmem>>, vector<8x32xf32>,
    %c3_i32_79 = arith.constant 3 : i32
    %c8_i32_80 = arith.constant 8 : i32
    %283 = arith.muli %c3_i32_79, %c8_i32_80 : i32
    %284 = tpu.assume_multiple %283, 8 : i32
    %285 = arith.index_cast %284 : i32 to index
    %c0_81 = arith.constant 0 : index
    %286 = vector.load %arg9[%285, %c0_81] : memref<64x128xf32, #tpu.memory_space<vmem>>, vector<8x128xf32>
    %cst_82 = arith.constant dense<0.000000e+00> : vector<8x128xf32>
    %287 = tpu.matmul %280, %208, %cst_82 {dimension_numbers = #tpu.dot_dimension_numbers<[1], [0], [0], [1], [0, 0, 1, 1], [], []>} : vector<8x32xf32>, vector<32x128xf32>, vector<8x128xf32> -> vector<8x128xf32>
    %288 = arith.addf %286, %287 : vector<8x128xf32>
    %289 = vector.extract_strided_slice %288 {offsets = [0, 0], sizes = [8, 96], strides = [1, 1]} : vector<8x128xf32> to vector<8x96xf32>
    %290 = arith.negf %289 : vector<8x96xf32>
    %291 = math.exp %290 : vector<8x96xf32>
    %cst_83 = arith.constant 1.000000e+00 : f32
    %292 = vector.broadcast %cst_83 : f32 to vector<8x96xf32>
    %293 = arith.addf %292, %291 : vector<8x96xf32>
    %294 = arith.divf %292, %293 : vector<8x96xf32>
    %295 = vector.extract_strided_slice %294 {offsets = [0, 0], sizes = [8, 32], strides = [1, 1]} : vector<8x96xf32> to vector<8x32xf32>
    %296 = vector.extract_strided_slice %294 {offsets = [0, 32], sizes = [8, 32], strides = [1, 1]} : vector<8x96xf32> to vector<8x32xf32>
    %297 = vector.extract_strided_slice %294 {offsets = [0, 64], sizes = [8, 32], strides = [1, 1]} : vector<8x96xf32> to vector<8x32xf32>
    %298 = vector.extract_strided_slice %288 {offsets = [0, 96], sizes = [8, 32], strides = [1, 1]} : vector<8x128xf32> to vector<8x32xf32>
    %299 = math.tanh %298 : vector<8x32xf32>
    %300 = arith.mulf %296, %278 : vector<8x32xf32>
    %301 = arith.mulf %295, %299 : vector<8x32xf32>
    %302 = arith.addf %300, %301 : vector<8x32xf32>
    %303 = math.tanh %302 : vector<8x32xf32>
    %304 = arith.mulf %297, %303 : vector<8x32xf32>
    %305 = arith.index_cast %284 : i32 to index
    %c0_84 = arith.constant 0 : index
    %306 = vector.load %arg8[%305, %c0_84] : memref<64x32xf32, #tpu.memory_space<vmem>>, vector<8x32xf32>
    tpu.vector_store %arg8[%305, %c0_84], %304 {strides = array<i32>} : memref<64x32xf32, #tpu.memory_space<vmem>>, vector<8x32xf32>,
    %c4_i32_85 = arith.constant 4 : i32
    %c8_i32_86 = arith.constant 8 : i32
    %307 = arith.muli %c4_i32_85, %c8_i32_86 : i32
    %308 = tpu.assume_multiple %307, 8 : i32
    %309 = arith.index_cast %308 : i32 to index
    %c0_87 = arith.constant 0 : index
    %310 = vector.load %arg9[%309, %c0_87] : memref<64x128xf32, #tpu.memory_space<vmem>>, vector<8x128xf32>
    %cst_88 = arith.constant dense<0.000000e+00> : vector<8x128xf32>
    %311 = tpu.matmul %304, %208, %cst_88 {dimension_numbers = #tpu.dot_dimension_numbers<[1], [0], [0], [1], [0, 0, 1, 1], [], []>} : vector<8x32xf32>, vector<32x128xf32>, vector<8x128xf32> -> vector<8x128xf32>
    %312 = arith.addf %310, %311 : vector<8x128xf32>
    %313 = vector.extract_strided_slice %312 {offsets = [0, 0], sizes = [8, 96], strides = [1, 1]} : vector<8x128xf32> to vector<8x96xf32>
    %314 = arith.negf %313 : vector<8x96xf32>
    %315 = math.exp %314 : vector<8x96xf32>
    %cst_89 = arith.constant 1.000000e+00 : f32
    %316 = vector.broadcast %cst_89 : f32 to vector<8x96xf32>
    %317 = arith.addf %316, %315 : vector<8x96xf32>
    %318 = arith.divf %316, %317 : vector<8x96xf32>
    %319 = vector.extract_strided_slice %318 {offsets = [0, 0], sizes = [8, 32], strides = [1, 1]} : vector<8x96xf32> to vector<8x32xf32>
    %320 = vector.extract_strided_slice %318 {offsets = [0, 32], sizes = [8, 32], strides = [1, 1]} : vector<8x96xf32> to vector<8x32xf32>
    %321 = vector.extract_strided_slice %318 {offsets = [0, 64], sizes = [8, 32], strides = [1, 1]} : vector<8x96xf32> to vector<8x32xf32>
    %322 = vector.extract_strided_slice %312 {offsets = [0, 96], sizes = [8, 32], strides = [1, 1]} : vector<8x128xf32> to vector<8x32xf32>
    %323 = math.tanh %322 : vector<8x32xf32>
    %324 = arith.mulf %320, %302 : vector<8x32xf32>
    %325 = arith.mulf %319, %323 : vector<8x32xf32>
    %326 = arith.addf %324, %325 : vector<8x32xf32>
    %327 = math.tanh %326 : vector<8x32xf32>
    %328 = arith.mulf %321, %327 : vector<8x32xf32>
    %329 = arith.index_cast %308 : i32 to index
    %c0_90 = arith.constant 0 : index
    %330 = vector.load %arg8[%329, %c0_90] : memref<64x32xf32, #tpu.memory_space<vmem>>, vector<8x32xf32>
    tpu.vector_store %arg8[%329, %c0_90], %328 {strides = array<i32>} : memref<64x32xf32, #tpu.memory_space<vmem>>, vector<8x32xf32>,
    %c5_i32_91 = arith.constant 5 : i32
    %c8_i32_92 = arith.constant 8 : i32
    %331 = arith.muli %c5_i32_91, %c8_i32_92 : i32
    %332 = tpu.assume_multiple %331, 8 : i32
    %333 = arith.index_cast %332 : i32 to index
    %c0_93 = arith.constant 0 : index
    %334 = vector.load %arg9[%333, %c0_93] : memref<64x128xf32, #tpu.memory_space<vmem>>, vector<8x128xf32>
    %cst_94 = arith.constant dense<0.000000e+00> : vector<8x128xf32>
    %335 = tpu.matmul %328, %208, %cst_94 {dimension_numbers = #tpu.dot_dimension_numbers<[1], [0], [0], [1], [0, 0, 1, 1], [], []>} : vector<8x32xf32>, vector<32x128xf32>, vector<8x128xf32> -> vector<8x128xf32>
    %336 = arith.addf %334, %335 : vector<8x128xf32>
    %337 = vector.extract_strided_slice %336 {offsets = [0, 0], sizes = [8, 96], strides = [1, 1]} : vector<8x128xf32> to vector<8x96xf32>
    %338 = arith.negf %337 : vector<8x96xf32>
    %339 = math.exp %338 : vector<8x96xf32>
    %cst_95 = arith.constant 1.000000e+00 : f32
    %340 = vector.broadcast %cst_95 : f32 to vector<8x96xf32>
    %341 = arith.addf %340, %339 : vector<8x96xf32>
    %342 = arith.divf %340, %341 : vector<8x96xf32>
    %343 = vector.extract_strided_slice %342 {offsets = [0, 0], sizes = [8, 32], strides = [1, 1]} : vector<8x96xf32> to vector<8x32xf32>
    %344 = vector.extract_strided_slice %342 {offsets = [0, 32], sizes = [8, 32], strides = [1, 1]} : vector<8x96xf32> to vector<8x32xf32>
    %345 = vector.extract_strided_slice %342 {offsets = [0, 64], sizes = [8, 32], strides = [1, 1]} : vector<8x96xf32> to vector<8x32xf32>
    %346 = vector.extract_strided_slice %336 {offsets = [0, 96], sizes = [8, 32], strides = [1, 1]} : vector<8x128xf32> to vector<8x32xf32>
    %347 = math.tanh %346 : vector<8x32xf32>
    %348 = arith.mulf %344, %326 : vector<8x32xf32>
    %349 = arith.mulf %343, %347 : vector<8x32xf32>
    %350 = arith.addf %348, %349 : vector<8x32xf32>
    %351 = math.tanh %350 : vector<8x32xf32>
    %352 = arith.mulf %345, %351 : vector<8x32xf32>
    %353 = arith.index_cast %332 : i32 to index
    %c0_96 = arith.constant 0 : index
    %354 = vector.load %arg8[%353, %c0_96] : memref<64x32xf32, #tpu.memory_space<vmem>>, vector<8x32xf32>
    tpu.vector_store %arg8[%353, %c0_96], %352 {strides = array<i32>} : memref<64x32xf32, #tpu.memory_space<vmem>>, vector<8x32xf32>,
    %c6_i32_97 = arith.constant 6 : i32
    %c8_i32_98 = arith.constant 8 : i32
    %355 = arith.muli %c6_i32_97, %c8_i32_98 : i32
    %356 = tpu.assume_multiple %355, 8 : i32
    %357 = arith.index_cast %356 : i32 to index
    %c0_99 = arith.constant 0 : index
    %358 = vector.load %arg9[%357, %c0_99] : memref<64x128xf32, #tpu.memory_space<vmem>>, vector<8x128xf32>
    %cst_100 = arith.constant dense<0.000000e+00> : vector<8x128xf32>
    %359 = tpu.matmul %352, %208, %cst_100 {dimension_numbers = #tpu.dot_dimension_numbers<[1], [0], [0], [1], [0, 0, 1, 1], [], []>} : vector<8x32xf32>, vector<32x128xf32>, vector<8x128xf32> -> vector<8x128xf32>
    %360 = arith.addf %358, %359 : vector<8x128xf32>
    %361 = vector.extract_strided_slice %360 {offsets = [0, 0], sizes = [8, 96], strides = [1, 1]} : vector<8x128xf32> to vector<8x96xf32>
    %362 = arith.negf %361 : vector<8x96xf32>
    %363 = math.exp %362 : vector<8x96xf32>
    %cst_101 = arith.constant 1.000000e+00 : f32
    %364 = vector.broadcast %cst_101 : f32 to vector<8x96xf32>
    %365 = arith.addf %364, %363 : vector<8x96xf32>
    %366 = arith.divf %364, %365 : vector<8x96xf32>
    %367 = vector.extract_strided_slice %366 {offsets = [0, 0], sizes = [8, 32], strides = [1, 1]} : vector<8x96xf32> to vector<8x32xf32>
    %368 = vector.extract_strided_slice %366 {offsets = [0, 32], sizes = [8, 32], strides = [1, 1]} : vector<8x96xf32> to vector<8x32xf32>
    %369 = vector.extract_strided_slice %366 {offsets = [0, 64], sizes = [8, 32], strides = [1, 1]} : vector<8x96xf32> to vector<8x32xf32>
    %370 = vector.extract_strided_slice %360 {offsets = [0, 96], sizes = [8, 32], strides = [1, 1]} : vector<8x128xf32> to vector<8x32xf32>
    %371 = math.tanh %370 : vector<8x32xf32>
    %372 = arith.mulf %368, %350 : vector<8x32xf32>
    %373 = arith.mulf %367, %371 : vector<8x32xf32>
    %374 = arith.addf %372, %373 : vector<8x32xf32>
    %375 = math.tanh %374 : vector<8x32xf32>
    %376 = arith.mulf %369, %375 : vector<8x32xf32>
    %377 = arith.index_cast %356 : i32 to index
    %c0_102 = arith.constant 0 : index
    %378 = vector.load %arg8[%377, %c0_102] : memref<64x32xf32, #tpu.memory_space<vmem>>, vector<8x32xf32>
    tpu.vector_store %arg8[%377, %c0_102], %376 {strides = array<i32>} : memref<64x32xf32, #tpu.memory_space<vmem>>, vector<8x32xf32>,
    %c7_i32_103 = arith.constant 7 : i32
    %c8_i32_104 = arith.constant 8 : i32
    %379 = arith.muli %c7_i32_103, %c8_i32_104 : i32
    %380 = tpu.assume_multiple %379, 8 : i32
    %381 = arith.index_cast %380 : i32 to index
    %c0_105 = arith.constant 0 : index
    %382 = vector.load %arg9[%381, %c0_105] : memref<64x128xf32, #tpu.memory_space<vmem>>, vector<8x128xf32>
    %cst_106 = arith.constant dense<0.000000e+00> : vector<8x128xf32>
    %383 = tpu.matmul %376, %208, %cst_106 {dimension_numbers = #tpu.dot_dimension_numbers<[1], [0], [0], [1], [0, 0, 1, 1], [], []>} : vector<8x32xf32>, vector<32x128xf32>, vector<8x128xf32> -> vector<8x128xf32>
    %384 = arith.addf %382, %383 : vector<8x128xf32>
    %385 = vector.extract_strided_slice %384 {offsets = [0, 0], sizes = [8, 96], strides = [1, 1]} : vector<8x128xf32> to vector<8x96xf32>
    %386 = arith.negf %385 : vector<8x96xf32>
    %387 = math.exp %386 : vector<8x96xf32>
    %cst_107 = arith.constant 1.000000e+00 : f32
    %388 = vector.broadcast %cst_107 : f32 to vector<8x96xf32>
    %389 = arith.addf %388, %387 : vector<8x96xf32>
    %390 = arith.divf %388, %389 : vector<8x96xf32>
    %391 = vector.extract_strided_slice %390 {offsets = [0, 0], sizes = [8, 32], strides = [1, 1]} : vector<8x96xf32> to vector<8x32xf32>
    %392 = vector.extract_strided_slice %390 {offsets = [0, 32], sizes = [8, 32], strides = [1, 1]} : vector<8x96xf32> to vector<8x32xf32>
    %393 = vector.extract_strided_slice %390 {offsets = [0, 64], sizes = [8, 32], strides = [1, 1]} : vector<8x96xf32> to vector<8x32xf32>
    %394 = vector.extract_strided_slice %384 {offsets = [0, 96], sizes = [8, 32], strides = [1, 1]} : vector<8x128xf32> to vector<8x32xf32>
    %395 = math.tanh %394 : vector<8x32xf32>
    %396 = arith.mulf %392, %374 : vector<8x32xf32>
    %397 = arith.mulf %391, %395 : vector<8x32xf32>
    %398 = arith.addf %396, %397 : vector<8x32xf32>
    %399 = math.tanh %398 : vector<8x32xf32>
    %400 = arith.mulf %393, %399 : vector<8x32xf32>
    %401 = arith.index_cast %380 : i32 to index
    %c0_108 = arith.constant 0 : index
    %402 = vector.load %arg8[%401, %c0_108] : memref<64x32xf32, #tpu.memory_space<vmem>>, vector<8x32xf32>
    tpu.vector_store %arg8[%401, %c0_108], %400 {strides = array<i32>} : memref<64x32xf32, #tpu.memory_space<vmem>>, vector<8x32xf32>,
    %c8_i32_109 = arith.constant 8 : i32
    %c1 = arith.constant 1 : index
    %c0_110 = arith.constant 0 : index
    %c0_111 = arith.constant 0 : index
    %403 = vector.load %arg6[%c1, %c0_110, %c0_111] : memref<2x8x32xf32, #tpu.memory_space<vmem>>, vector<1x8x32xf32>
    %404 = vector.shape_cast %403 : vector<1x8x32xf32> to vector<8x32xf32>
    %405 = vector.shape_cast %400 : vector<8x32xf32> to vector<1x8x32xf32>
    tpu.vector_store %arg6[%c1, %c0_110, %c0_111], %405 {strides = array<i32>} : memref<2x8x32xf32, #tpu.memory_space<vmem>>, vector<1x8x32xf32>,
    %c1_112 = arith.constant 1 : index
    %c0_113 = arith.constant 0 : index
    %c0_114 = arith.constant 0 : index
    %406 = vector.load %arg7[%c1_112, %c0_113, %c0_114] : memref<2x8x32xf32, #tpu.memory_space<vmem>>, vector<1x8x32xf32>
    %407 = vector.shape_cast %406 : vector<1x8x32xf32> to vector<8x32xf32>
    %408 = vector.shape_cast %398 : vector<8x32xf32> to vector<1x8x32xf32>
    tpu.vector_store %arg7[%c1_112, %c0_113, %c0_114], %408 {strides = array<i32>} : memref<2x8x32xf32, #tpu.memory_space<vmem>>, vector<1x8x32xf32>,
    return
  }
  func.func @transform_0(%arg0: i32) -> (i32, i32) {
    %c0_i32 = arith.constant 0 : i32
    %c0_i32_0 = arith.constant 0 : i32
    %c0_i32_1 = arith.constant 0 : i32
    return %c0_i32, %c0_i32_0 : i32, i32
  }
  func.func @transform_1(%arg0: i32) -> (i32, i32) {
    %c0_i32 = arith.constant 0 : i32
    %c0_i32_0 = arith.constant 0 : i32
    %c0_i32_1 = arith.constant 0 : i32
    return %c0_i32, %c0_i32_0 : i32, i32
  }
  func.func @transform_2(%arg0: i32) -> (i32, i32) {
    %c0_i32 = arith.constant 0 : i32
    %c0_i32_0 = arith.constant 0 : i32
    %c0_i32_1 = arith.constant 0 : i32
    return %c0_i32, %c0_i32_0 : i32, i32
  }
  func.func @transform_3(%arg0: i32) -> (i32, i32) {
    %c0_i32 = arith.constant 0 : i32
    %c0_i32_0 = arith.constant 0 : i32
    %c0_i32_1 = arith.constant 0 : i32
    return %c0_i32, %c0_i32_0 : i32, i32
  }
  func.func @transform_4(%arg0: i32) -> (i32, i32) {
    %c0_i32 = arith.constant 0 : i32
    %c0_i32_0 = arith.constant 0 : i32
    %c0_i32_1 = arith.constant 0 : i32
    return %c0_i32, %c0_i32_0 : i32, i32
  }
  func.func @transform_5(%arg0: i32) -> (i32, i32, i32) {
    %c0_i32 = arith.constant 0 : i32
    %c0_i32_0 = arith.constant 0 : i32
    %c0_i32_1 = arith.constant 0 : i32
    %c0_i32_2 = arith.constant 0 : i32
    return %c0_i32, %c0_i32_0, %c0_i32_1 : i32, i32, i32
  }
  func.func @transform_6(%arg0: i32) -> (i32, i32, i32) {
    %c0_i32 = arith.constant 0 : i32
    %c0_i32_0 = arith.constant 0 : i32
    %c0_i32_1 = arith.constant 0 : i32
    %c0_i32_2 = arith.constant 0 : i32
    return %c0_i32, %c0_i32_0, %c0_i32_1 : i32, i32, i32
  }
}

</mosaic_0001>

<llo_original>
// kernel: encoder_forward.1
$region0: #{encoder_forward.1}
  #allocation0 [shape = 'u32[]', space=smem, size = 0x4, offset = 0x4, fixed_abs, tag = 'smem constant byte address 0x4 - core index']
  #allocation1 [shape = 'u32[144,128]{1,0:T(1,128)}', space=vmem, size = 0x12000, scoped, tag = 'internal scratch']
  #allocation2 [shape = 'f32[64,32]{1,0:T(8,128)}', space=vmem, size = 0x8000, scoped, tag = 'scratch operand']
  #allocation3 [shape = 'f32[64,128]{1,0:T(8,128)}', space=vmem, size = 0x8000, scoped, tag = 'scratch operand']
  %s0 = inlined_call_operand.vmem [shape: f32[64,128], index: 0, kind: input, shape index: {}]
  %s1 = inlined_call_operand.vmem [shape: f32[32,128], index: 1, kind: input, shape index: {}]
  %s2 = inlined_call_operand.vmem [shape: f32[32,128], index: 2, kind: input, shape index: {}]
  %s3 = inlined_call_operand.vmem [shape: f32[32,128], index: 3, kind: input, shape index: {}]
  %s4 = inlined_call_operand.vmem [shape: f32[1,128], index: 4, kind: input, shape index: {}]
  %s5 = inlined_call_operand.vmem [shape: f32[2,8,32], index: 5, kind: output, shape index: {0}]
  %s6 = inlined_call_operand.vmem [shape: f32[2,8,32], index: 6, kind: output, shape index: {1}]
  %7 = xla_tuple %s5, %s6
  %s8 = sld [smem:[#allocation0]]
  $region38: #{encoder_forward.1} parent=0
    _
  %s10 = ssub.s32 1, %s8
  %s11 = scalar_select 0, %s10, %s8
  // Predicated region
  $region2: #{encoder_forward.1} parent=0 // pred_check
    _
  $region3: #{encoder_forward.1} parent=0 // pred_check_branch
    %13 = sbr.rel (0) target = $region5
  $region4: #{encoder_forward.1} parent=0 // pred_region
    _
  $region5: #{encoder_forward.1} parent=0 // pred_fallthru
    _
  // Predicated region
  $region6: #{encoder_forward.1} parent=0 // pred_check
    _
  $region7: #{encoder_forward.1} parent=0 // pred_check_branch
    %15 = sbr.rel (0) target = $region9
  $region8: #{encoder_forward.1} parent=0 // pred_region
    _
  $region9: #{encoder_forward.1} parent=0 // pred_fallthru
    _
  // Predicated region
  $region10: #{encoder_forward.1} parent=0 // pred_check
    _
  $region11: #{encoder_forward.1} parent=0 // pred_check_branch
    %17 = sbr.rel (0) target = $region13
  $region12: #{encoder_forward.1} parent=0 // pred_region
    _
  $region13: #{encoder_forward.1} parent=0 // pred_fallthru
    _
  // Predicated region
  $region14: #{encoder_forward.1} parent=0 // pred_check
    _
  $region15: #{encoder_forward.1} parent=0 // pred_check_branch
    %19 = sbr.rel (0) target = $region17
  $region16: #{encoder_forward.1} parent=0 // pred_region
    _
  $region17: #{encoder_forward.1} parent=0 // pred_fallthru
    _
  // Predicated region
  $region18: #{encoder_forward.1} parent=0 // pred_check
    _
  $region19: #{encoder_forward.1} parent=0 // pred_check_branch
    %21 = sbr.rel (0) target = $region21
  $region20: #{encoder_forward.1} parent=0 // pred_region
    _
  $region21: #{encoder_forward.1} parent=0 // pred_fallthru
    _
  %v22 = vld [vmem:[%s1] sm:$0xff]
  %v23 = vld [vmem:[%s1 + $0x8] sm:$0xff]
  %v24 = vld [vmem:[%s1 + $0x10] sm:$0xff]
  %v25 = vld [vmem:[%s1 + $0x18] sm:$0xff]
  %v26 = vld [vmem:[%s0] sm:$0xff]
  %vm27 = vcmask 261120
  %v29 = vsel %vm27, 0.0, 0
  %31 = vmatprep.subr.mxu0 0.0
  %32 = vmatpush1.msra.mxu0 %v22
  %33 = vmatprep.subr.mxu0 0.0
  %34 = vmatpush1.msra.mxu0 %v23
  %35 = vmatprep.subr.mxu0 0.0
  %36 = vmatpush1.msra.mxu0 %v24
  %37 = vmatprep.subr.mxu0 0.0
  %38 = vmatpush1.msra.mxu0 %v25
  %39 = vmatprep.subr.mxu0 0.0
  %40 = vmatpush1.msra.mxu0 0.0
  %41 = vmatprep.subr.mxu0 0.0
  %42 = vmatpush1.msra.mxu0 0.0
  %43 = vmatprep.subr.mxu0 0.0
  %44 = vmatpush1.msra.mxu0 0.0
  %45 = vmatprep.subr.mxu0 0.0
  %46 = vmatpush1.msra.mxu0 0.0
  %47 = vmatprep.subr.mxu0 0.0
  %48 = vmatpush1.msra.mxu0 0.0
  %49 = vmatprep.subr.mxu0 0.0
  %50 = vmatpush1.msra.mxu0 0.0
  %51 = vmatprep.subr.mxu0 0.0
  %52 = vmatpush1.msra.mxu0 0.0
  %53 = vmatprep.subr.mxu0 0.0
  %54 = vmatpush1.msra.mxu0 0.0
  %55 = vmatprep.subr.mxu0 0.0
  %56 = vmatpush1.msra.mxu0 0.0
  %57 = vmatprep.subr.mxu0 0.0
  %58 = vmatpush1.msra.mxu0 0.0
  %59 = vmatprep.subr.mxu0 0.0
  %60 = vmatpush1.msra.mxu0 0.0
  %61 = vmatprep.subr.mxu0 0.0
  %62 = vmatpush1.msra.mxu0 0.0
  %63 = vmatprep.subr.mxu0 0.0
  %64 = vmatpush1.msra.mxu0 0.0
  %65 = vmatprep.subr.mxu0 0.0
  %66 = vmatpush1.msra.mxu0 0.0
  %67 = vmatprep.subr.mxu0 0.0
  %68 = vmatpush1.msra.mxu0 0.0
  %69 = vmatprep.subr.mxu0 0.0
  %70 = vmatpush1.msra.mxu0 0.0
  %71 = vmatprep.subr.mxu0 0.0
  %72 = vmatpush1.msra.mxu0 0.0
  %73 = vmatprep.subr.mxu0 0.0
  %74 = vmatpush1.msra.mxu0 0.0
  %75 = vmatprep.subr.mxu0 0.0
  %76 = vmatpush1.msra.mxu0 0.0
  %77 = vmatprep.subr.mxu0 0.0
  %78 = vmatpush1.msra.mxu0 0.0
  %79 = vmatprep.subr.mxu0 0.0
  %80 = vmatpush1.msra.mxu0 0.0
  %81 = vmatprep.subr.mxu0 0.0
  %82 = vmatpush1.msra.mxu0 0.0
  %83 = vmatprep.subr.mxu0 0.0
  %84 = vmatpush1.msra.mxu0 0.0
  %85 = vmatprep.subr.mxu0 0.0
  %86 = vmatpush1.msra.mxu0 0.0
  %87 = vmatprep.subr.mxu0 0.0
  %88 = vmatpush1.msra.mxu0 0.0
  %89 = vmatprep.subr.mxu0 0.0
  %90 = vmatpush1.msra.mxu0 0.0
  %91 = vmatprep.subr.mxu0 0.0
  %92 = vmatpush1.msra.mxu0 0.0
  %93 = vmatprep.subr.mxu0 0.0
  %94 = vmatpush1.msra.mxu0 0.0
  %95 = vmatprep.mubr.f32.mxu0 0.0
  %96 = vmatmul.mubr.f32.gmra.mrb[0].mxu0 %v29
  %v97 = vpop.f32.mrb[0].mxu0
  %v98 = vadd.f32 0.0, %v97
  %v99 = vpop.f32.mrb[0].mxu0
  %100 = vdwg.mxu0
  %v101 = vadd.f32 %v26, %v98
  %v102 = vxor.u32 %v101, 2147483648
  %v103 = vmul.f32 %v102, 1.442695
  %v104 = vpow.pop %v103
  %v105 = vadd.f32 %v104, 1.0
  %v106 = vrcp.pop %v105
  %v107 = vmul.f32 1.0, %v106
  %v108 = vtanh.pop %v101
  %v109 = vmul.f32 %v107, 0.0
  %111 = vrot.lane.b32.xlu0 %v108, 32
  %v112 = vpop.permute.xlu0 %111
  %v114 = vmul.f32 %v107, %v112
  %116 = vrot.lane.b32.xlu0 %v114, 32
  %v117 = vpop.permute.xlu0 %116
  %v119 = vadd.f32 %v109, %v117
  %v120 = vtanh.pop %v119
  %122 = vrot.lane.b32.xlu0 %v120, 32
  %v123 = vpop.permute.xlu0 %122
  %v125 = vmul.f32 %v107, %v123
  %127 = vrot.lane.b32.xlu0 %v125, 64
  %v128 = vpop.permute.xlu0 %127
  %130 = vst.msk [vmem:[#allocation2] sm:$0xff] %vm27, %v128
  %s131 = scalar_lea.vmem %s0, 8
  %v132 = vld [vmem:[%s131] sm:$0xff]
  %v133 = vsel %vm27, %v128, 0
  %135 = vmatprep.subr.mxu0 0.0
  %136 = vmatpush1.msra.mxu0 %v22
  %137 = vmatprep.subr.mxu0 0.0
  %138 = vmatpush1.msra.mxu0 %v23
  %139 = vmatprep.subr.mxu0 0.0
  %140 = vmatpush1.msra.mxu0 %v24
  %141 = vmatprep.subr.mxu0 0.0
  %142 = vmatpush1.msra.mxu0 %v25
  %143 = vmatprep.subr.mxu0 0.0
  %144 = vmatpush1.msra.mxu0 0.0
  %145 = vmatprep.subr.mxu0 0.0
  %146 = vmatpush1.msra.mxu0 0.0
  %147 = vmatprep.subr.mxu0 0.0
  %148 = vmatpush1.msra.mxu0 0.0
  %149 = vmatprep.subr.mxu0 0.0
  %150 = vmatpush1.msra.mxu0 0.0
  %151 = vmatprep.subr.mxu0 0.0
  %152 = vmatpush1.msra.mxu0 0.0
  %153 = vmatprep.subr.mxu0 0.0
  %154 = vmatpush1.msra.mxu0 0.0
  %155 = vmatprep.subr.mxu0 0.0
  %156 = vmatpush1.msra.mxu0 0.0
  %157 = vmatprep.subr.mxu0 0.0
  %158 = vmatpush1.msra.mxu0 0.0
  %159 = vmatprep.subr.mxu0 0.0
  %160 = vmatpush1.msra.mxu0 0.0
  %161 = vmatprep.subr.mxu0 0.0
  %162 = vmatpush1.msra.mxu0 0.0
  %163 = vmatprep.subr.mxu0 0.0
  %164 = vmatpush1.msra.mxu0 0.0
  %165 = vmatprep.subr.mxu0 0.0
  %166 = vmatpush1.msra.mxu0 0.0
  %167 = vmatprep.subr.mxu0 0.0
  %168 = vmatpush1.msra.mxu0 0.0
  %169 = vmatprep.subr.mxu0 0.0
  %170 = vmatpush1.msra.mxu0 0.0
  %171 = vmatprep.subr.mxu0 0.0
  %172 = vmatpush1.msra.mxu0 0.0
  %173 = vmatprep.subr.mxu0 0.0
  %174 = vmatpush1.msra.mxu0 0.0
  %175 = vmatprep.subr.mxu0 0.0
  %176 = vmatpush1.msra.mxu0 0.0
  %177 = vmatprep.subr.mxu0 0.0
  %178 = vmatpush1.msra.mxu0 0.0
  %179 = vmatprep.subr.mxu0 0.0
  %180 = vmatpush1.msra.mxu0 0.0
  %181 = vmatprep.subr.mxu0 0.0
  %182 = vmatpush1.msra.mxu0 0.0
  %183 = vmatprep.subr.mxu0 0.0
  %184 = vmatpush1.msra.mxu0 0.0
  %185 = vmatprep.subr.mxu0 0.0
  %186 = vmatpush1.msra.mxu0 0.0
  %187 = vmatprep.subr.mxu0 0.0
  %188 = vmatpush1.msra.mxu0 0.0
  %189 = vmatprep.subr.mxu0 0.0
  %190 = vmatpush1.msra.mxu0 0.0
  %191 = vmatprep.subr.mxu0 0.0
  %192 = vmatpush1.msra.mxu0 0.0
  %193 = vmatprep.subr.mxu0 0.0
  %194 = vmatpush1.msra.mxu0 0.0
  %195 = vmatprep.subr.mxu0 0.0
  %196 = vmatpush1.msra.mxu0 0.0
  %197 = vmatprep.subr.mxu0 0.0
  %198 = vmatpush1.msra.mxu0 0.0
  %199 = vmatprep.mubr.f32.mxu0 0.0
  %200 = vmatmul.mubr.f32.gmra.mrb[0].mxu0 %v133
  %v201 = vpop.f32.mrb[0].mxu0
  %v202 = vadd.f32 0.0, %v201
  %v203 = vpop.f32.mrb[0].mxu0
  %204 = vdwg.mxu0
  %v205 = vadd.f32 %v132, %v202
  %v206 = vxor.u32 %v205, 2147483648
  %v207 = vmul.f32 %v206, 1.442695
  %v208 = vpow.pop %v207
  %v209 = vadd.f32 %v208, 1.0
  %v210 = vrcp.pop %v209
  %v211 = vmul.f32 1.0, %v210
  %v212 = vtanh.pop %v205
  %v213 = vmul.f32 %v211, %v119
  %215 = vrot.lane.b32.xlu0 %v212, 32
  %v216 = vpop.permute.xlu0 %215
  %v218 = vmul.f32 %v211, %v216
  %220 = vrot.lane.b32.xlu0 %v218, 32
  %v221 = vpop.permute.xlu0 %220
  %v223 = vadd.f32 %v213, %v221
  %v224 = vtanh.pop %v223
  %226 = vrot.lane.b32.xlu0 %v224, 32
  %v227 = vpop.permute.xlu0 %226
  %v229 = vmul.f32 %v211, %v227
  %231 = vrot.lane.b32.xlu0 %v229, 64
  %v232 = vpop.permute.xlu0 %231
  %s234 = scalar_lea.vmem [#allocation2], 8
  %235 = vst.msk [vmem:[%s234] sm:$0xff] %vm27, %v232
  %s236 = scalar_lea.vmem %s0, 16
  %v237 = vld [vmem:[%s236] sm:$0xff]
  %v238 = vsel %vm27, %v232, 0
  %240 = vmatprep.subr.mxu0 0.0
  %241 = vmatpush1.msra.mxu0 %v22
  %242 = vmatprep.subr.mxu0 0.0
  %243 = vmatpush1.msra.mxu0 %v23
  %244 = vmatprep.subr.mxu0 0.0
  %245 = vmatpush1.msra.mxu0 %v24
  %246 = vmatprep.subr.mxu0 0.0
  %247 = vmatpush1.msra.mxu0 %v25
  %248 = vmatprep.subr.mxu0 0.0
  %249 = vmatpush1.msra.mxu0 0.0
  %250 = vmatprep.subr.mxu0 0.0
  %251 = vmatpush1.msra.mxu0 0.0
  %252 = vmatprep.subr.mxu0 0.0
  %253 = vmatpush1.msra.mxu0 0.0
  %254 = vmatprep.subr.mxu0 0.0
  %255 = vmatpush1.msra.mxu0 0.0
  %256 = vmatprep.subr.mxu0 0.0
  %257 = vmatpush1.msra.mxu0 0.0
  %258 = vmatprep.subr.mxu0 0.0
  %259 = vmatpush1.msra.mxu0 0.0
  %260 = vmatprep.subr.mxu0 0.0
  %261 = vmatpush1.msra.mxu0 0.0
  %262 = vmatprep.subr.mxu0 0.0
  %263 = vmatpush1.msra.mxu0 0.0
  %264 = vmatprep.subr.mxu0 0.0
  %265 = vmatpush1.msra.mxu0 0.0
  %266 = vmatprep.subr.mxu0 0.0
  %267 = vmatpush1.msra.mxu0 0.0
  %268 = vmatprep.subr.mxu0 0.0
  %269 = vmatpush1.msra.mxu0 0.0
  %270 = vmatprep.subr.mxu0 0.0
  %271 = vmatpush1.msra.mxu0 0.0
  %272 = vmatprep.subr.mxu0 0.0
  %273 = vmatpush1.msra.mxu0 0.0
  %274 = vmatprep.subr.mxu0 0.0
  %275 = vmatpush1.msra.mxu0 0.0
  %276 = vmatprep.subr.mxu0 0.0
  %277 = vmatpush1.msra.mxu0 0.0
  %278 = vmatprep.subr.mxu0 0.0
  %279 = vmatpush1.msra.mxu0 0.0
  %280 = vmatprep.subr.mxu0 0.0
  %281 = vmatpush1.msra.mxu0 0.0
  %282 = vmatprep.subr.mxu0 0.0
  %283 = vmatpush1.msra.mxu0 0.0
  %284 = vmatprep.subr.mxu0 0.0
  %285 = vmatpush1.msra.mxu0 0.0
  %286 = vmatprep.subr.mxu0 0.0
  %287 = vmatpush1.msra.mxu0 0.0
  %288 = vmatprep.subr.mxu0 0.0
  %289 = vmatpush1.msra.mxu0 0.0
  %290 = vmatprep.subr.mxu0 0.0
  %291 = vmatpush1.msra.mxu0 0.0
  %292 = vmatprep.subr.mxu0 0.0
  %293 = vmatpush1.msra.mxu0 0.0
  %294 = vmatprep.subr.mxu0 0.0
  %295 = vmatpush1.msra.mxu0 0.0
  %296 = vmatprep.subr.mxu0 0.0
  %297 = vmatpush1.msra.mxu0 0.0
  %298 = vmatprep.subr.mxu0 0.0
  %299 = vmatpush1.msra.mxu0 0.0
  %300 = vmatprep.subr.mxu0 0.0
  %301 = vmatpush1.msra.mxu0 0.0
  %302 = vmatprep.subr.mxu0 0.0
  %303 = vmatpush1.msra.mxu0 0.0
  %304 = vmatprep.mubr.f32.mxu0 0.0
  %305 = vmatmul.mubr.f32.gmra.mrb[0].mxu0 %v238
  %v306 = vpop.f32.mrb[0].mxu0
  %v307 = vadd.f32 0.0, %v306
  %v308 = vpop.f32.mrb[0].mxu0
  %309 = vdwg.mxu0
  %v310 = vadd.f32 %v237, %v307
  %v311 = vxor.u32 %v310, 2147483648
  %v312 = vmul.f32 %v311, 1.442695
  %v313 = vpow.pop %v312
  %v314 = vadd.f32 %v313, 1.0
  %v315 = vrcp.pop %v314
  %v316 = vmul.f32 1.0, %v315
  %v317 = vtanh.pop %v310
  %v318 = vmul.f32 %v316, %v223
  %320 = vrot.lane.b32.xlu0 %v317, 32
  %v321 = vpop.permute.xlu0 %320
  %v323 = vmul.f32 %v316, %v321
  %325 = vrot.lane.b32.xlu0 %v323, 32
  %v326 = vpop.permute.xlu0 %325
  %v328 = vadd.f32 %v318, %v326
  %v329 = vtanh.pop %v328
  %331 = vrot.lane.b32.xlu0 %v329, 32
  %v332 = vpop.permute.xlu0 %331
  %v334 = vmul.f32 %v316, %v332
  %336 = vrot.lane.b32.xlu0 %v334, 64
  %v337 = vpop.permute.xlu0 %336
  %s339 = scalar_lea.vmem [#allocation2], 16
  %340 = vst.msk [vmem:[%s339] sm:$0xff] %vm27, %v337
  %s341 = scalar_lea.vmem %s0, 24
  %v342 = vld [vmem:[%s341] sm:$0xff]
  %v343 = vsel %vm27, %v337, 0
  %345 = vmatprep.subr.mxu0 0.0
  %346 = vmatpush1.msra.mxu0 %v22
  %347 = vmatprep.subr.mxu0 0.0
  %348 = vmatpush1.msra.mxu0 %v23
  %349 = vmatprep.subr.mxu0 0.0
  %350 = vmatpush1.msra.mxu0 %v24
  %351 = vmatprep.subr.mxu0 0.0
  %352 = vmatpush1.msra.mxu0 %v25
  %353 = vmatprep.subr.mxu0 0.0
  %354 = vmatpush1.msra.mxu0 0.0
  %355 = vmatprep.subr.mxu0 0.0
  %356 = vmatpush1.msra.mxu0 0.0
  %357 = vmatprep.subr.mxu0 0.0
  %358 = vmatpush1.msra.mxu0 0.0
  %359 = vmatprep.subr.mxu0 0.0
  %360 = vmatpush1.msra.mxu0 0.0
  %361 = vmatprep.subr.mxu0 0.0
  %362 = vmatpush1.msra.mxu0 0.0
  %363 = vmatprep.subr.mxu0 0.0
  %364 = vmatpush1.msra.mxu0 0.0
  %365 = vmatprep.subr.mxu0 0.0
  %366 = vmatpush1.msra.mxu0 0.0
  %367 = vmatprep.subr.mxu0 0.0
  %368 = vmatpush1.msra.mxu0 0.0
  %369 = vmatprep.subr.mxu0 0.0
  %370 = vmatpush1.msra.mxu0 0.0
  %371 = vmatprep.subr.mxu0 0.0
  %372 = vmatpush1.msra.mxu0 0.0
  %373 = vmatprep.subr.mxu0 0.0
  %374 = vmatpush1.msra.mxu0 0.0
  %375 = vmatprep.subr.mxu0 0.0
  %376 = vmatpush1.msra.mxu0 0.0
  %377 = vmatprep.subr.mxu0 0.0
  %378 = vmatpush1.msra.mxu0 0.0
  %379 = vmatprep.subr.mxu0 0.0
  %380 = vmatpush1.msra.mxu0 0.0
  %381 = vmatprep.subr.mxu0 0.0
  %382 = vmatpush1.msra.mxu0 0.0
  %383 = vmatprep.subr.mxu0 0.0
  %384 = vmatpush1.msra.mxu0 0.0
  %385 = vmatprep.subr.mxu0 0.0
  %386 = vmatpush1.msra.mxu0 0.0
  %387 = vmatprep.subr.mxu0 0.0
  %388 = vmatpush1.msra.mxu0 0.0
  %389 = vmatprep.subr.mxu0 0.0
  %390 = vmatpush1.msra.mxu0 0.0
  %391 = vmatprep.subr.mxu0 0.0
  %392 = vmatpush1.msra.mxu0 0.0
  %393 = vmatprep.subr.mxu0 0.0
  %394 = vmatpush1.msra.mxu0 0.0
  %395 = vmatprep.subr.mxu0 0.0
  %396 = vmatpush1.msra.mxu0 0.0
  %397 = vmatprep.subr.mxu0 0.0
  %398 = vmatpush1.msra.mxu0 0.0
  %399 = vmatprep.subr.mxu0 0.0
  %400 = vmatpush1.msra.mxu0 0.0
  %401 = vmatprep.subr.mxu0 0.0
  %402 = vmatpush1.msra.mxu0 0.0
  %403 = vmatprep.subr.mxu0 0.0
  %404 = vmatpush1.msra.mxu0 0.0
  %405 = vmatprep.subr.mxu0 0.0
  %406 = vmatpush1.msra.mxu0 0.0
  %407 = vmatprep.subr.mxu0 0.0
  %408 = vmatpush1.msra.mxu0 0.0
  %409 = vmatprep.mubr.f32.mxu0 0.0
  %410 = vmatmul.mubr.f32.gmra.mrb[0].mxu0 %v343
  %v411 = vpop.f32.mrb[0].mxu0
  %v412 = vadd.f32 0.0, %v411
  %v413 = vpop.f32.mrb[0].mxu0
  %414 = vdwg.mxu0
  %v415 = vadd.f32 %v342, %v412
  %v416 = vxor.u32 %v415, 2147483648
  %v417 = vmul.f32 %v416, 1.442695
  %v418 = vpow.pop %v417
  %v419 = vadd.f32 %v418, 1.0
  %v420 = vrcp.pop %v419
  %v421 = vmul.f32 1.0, %v420
  %v422 = vtanh.pop %v415
  %v423 = vmul.f32 %v421, %v328
  %425 = vrot.lane.b32.xlu0 %v422, 32
  %v426 = vpop.permute.xlu0 %425
  %v428 = vmul.f32 %v421, %v426
  %430 = vrot.lane.b32.xlu0 %v428, 32
  %v431 = vpop.permute.xlu0 %430
  %v433 = vadd.f32 %v423, %v431
  %v434 = vtanh.pop %v433
  %436 = vrot.lane.b32.xlu0 %v434, 32
  %v437 = vpop.permute.xlu0 %436
  %v439 = vmul.f32 %v421, %v437
  %441 = vrot.lane.b32.xlu0 %v439, 64
  %v442 = vpop.permute.xlu0 %441
  %s444 = scalar_lea.vmem [#allocation2], 24
  %445 = vst.msk [vmem:[%s444] sm:$0xff] %vm27, %v442
  %s446 = scalar_lea.vmem %s0, 32
  %v447 = vld [vmem:[%s446] sm:$0xff]
  %v448 = vsel %vm27, %v442, 0
  %450 = vmatprep.subr.mxu0 0.0
  %451 = vmatpush1.msra.mxu0 %v22
  %452 = vmatprep.subr.mxu0 0.0
  %453 = vmatpush1.msra.mxu0 %v23
  %454 = vmatprep.subr.mxu0 0.0
  %455 = vmatpush1.msra.mxu0 %v24
  %456 = vmatprep.subr.mxu0 0.0
  %457 = vmatpush1.msra.mxu0 %v25
  %458 = vmatprep.subr.mxu0 0.0
  %459 = vmatpush1.msra.mxu0 0.0
  %460 = vmatprep.subr.mxu0 0.0
  %461 = vmatpush1.msra.mxu0 0.0
  %462 = vmatprep.subr.mxu0 0.0
  %463 = vmatpush1.msra.mxu0 0.0
  %464 = vmatprep.subr.mxu0 0.0
  %465 = vmatpush1.msra.mxu0 0.0
  %466 = vmatprep.subr.mxu0 0.0
  %467 = vmatpush1.msra.mxu0 0.0
  %468 = vmatprep.subr.mxu0 0.0
  %469 = vmatpush1.msra.mxu0 0.0
  %470 = vmatprep.subr.mxu0 0.0
  %471 = vmatpush1.msra.mxu0 0.0
  %472 = vmatprep.subr.mxu0 0.0
  %473 = vmatpush1.msra.mxu0 0.0
  %474 = vmatprep.subr.mxu0 0.0
  %475 = vmatpush1.msra.mxu0 0.0
  %476 = vmatprep.subr.mxu0 0.0
  %477 = vmatpush1.msra.mxu0 0.0
  %478 = vmatprep.subr.mxu0 0.0
  %479 = vmatpush1.msra.mxu0 0.0
  %480 = vmatprep.subr.mxu0 0.0
  %481 = vmatpush1.msra.mxu0 0.0
  %482 = vmatprep.subr.mxu0 0.0
  %483 = vmatpush1.msra.mxu0 0.0
  %484 = vmatprep.subr.mxu0 0.0
  %485 = vmatpush1.msra.mxu0 0.0
  %486 = vmatprep.subr.mxu0 0.0
  %487 = vmatpush1.msra.mxu0 0.0
  %488 = vmatprep.subr.mxu0 0.0
  %489 = vmatpush1.msra.mxu0 0.0
  %490 = vmatprep.subr.mxu0 0.0
  %491 = vmatpush1.msra.mxu0 0.0
  %492 = vmatprep.subr.mxu0 0.0
  %493 = vmatpush1.msra.mxu0 0.0
  %494 = vmatprep.subr.mxu0 0.0
  %495 = vmatpush1.msra.mxu0 0.0
  %496 = vmatprep.subr.mxu0 0.0
  %497 = vmatpush1.msra.mxu0 0.0
  %498 = vmatprep.subr.mxu0 0.0
  %499 = vmatpush1.msra.mxu0 0.0
  %500 = vmatprep.subr.mxu0 0.0
  %501 = vmatpush1.msra.mxu0 0.0
  %502 = vmatprep.subr.mxu0 0.0
  %503 = vmatpush1.msra.mxu0 0.0
  %504 = vmatprep.subr.mxu0 0.0
  %505 = vmatpush1.msra.mxu0 0.0
  %506 = vmatprep.subr.mxu0 0.0
  %507 = vmatpush1.msra.mxu0 0.0
  %508 = vmatprep.subr.mxu0 0.0
  %509 = vmatpush1.msra.mxu0 0.0
  %510 = vmatprep.subr.mxu0 0.0
  %511 = vmatpush1.msra.mxu0 0.0
  %512 = vmatprep.subr.mxu0 0.0
  %513 = vmatpush1.msra.mxu0 0.0
  %514 = vmatprep.mubr.f32.mxu0 0.0
  %515 = vmatmul.mubr.f32.gmra.mrb[0].mxu0 %v448
  %v516 = vpop.f32.mrb[0].mxu0
  %v517 = vadd.f32 0.0, %v516
  %v518 = vpop.f32.mrb[0].mxu0
  %519 = vdwg.mxu0
  %v520 = vadd.f32 %v447, %v517
  %v521 = vxor.u32 %v520, 2147483648
  %v522 = vmul.f32 %v521, 1.442695
  %v523 = vpow.pop %v522
  %v524 = vadd.f32 %v523, 1.0
  %v525 = vrcp.pop %v524
  %v526 = vmul.f32 1.0, %v525
  %v527 = vtanh.pop %v520
  %v528 = vmul.f32 %v526, %v433
  %530 = vrot.lane.b32.xlu0 %v527, 32
  %v531 = vpop.permute.xlu0 %530
  %v533 = vmul.f32 %v526, %v531
  %535 = vrot.lane.b32.xlu0 %v533, 32
  %v536 = vpop.permute.xlu0 %535
  %v538 = vadd.f32 %v528, %v536
  %v539 = vtanh.pop %v538
  %541 = vrot.lane.b32.xlu0 %v539, 32
  %v542 = vpop.permute.xlu0 %541
  %v544 = vmul.f32 %v526, %v542
  %546 = vrot.lane.b32.xlu0 %v544, 64
  %v547 = vpop.permute.xlu0 %546
  %s549 = scalar_lea.vmem [#allocation2], 32
  %550 = vst.msk [vmem:[%s549] sm:$0xff] %vm27, %v547
  %s551 = scalar_lea.vmem %s0, 40
  %v552 = vld [vmem:[%s551] sm:$0xff]
  %v553 = vsel %vm27, %v547, 0
  %555 = vmatprep.subr.mxu0 0.0
  %556 = vmatpush1.msra.mxu0 %v22
  %557 = vmatprep.subr.mxu0 0.0
  %558 = vmatpush1.msra.mxu0 %v23
  %559 = vmatprep.subr.mxu0 0.0
  %560 = vmatpush1.msra.mxu0 %v24
  %561 = vmatprep.subr.mxu0 0.0
  %562 = vmatpush1.msra.mxu0 %v25
  %563 = vmatprep.subr.mxu0 0.0
  %564 = vmatpush1.msra.mxu0 0.0
  %565 = vmatprep.subr.mxu0 0.0
  %566 = vmatpush1.msra.mxu0 0.0
  %567 = vmatprep.subr.mxu0 0.0
  %568 = vmatpush1.msra.mxu0 0.0
  %569 = vmatprep.subr.mxu0 0.0
  %570 = vmatpush1.msra.mxu0 0.0
  %571 = vmatprep.subr.mxu0 0.0
  %572 = vmatpush1.msra.mxu0 0.0
  %573 = vmatprep.subr.mxu0 0.0
  %574 = vmatpush1.msra.mxu0 0.0
  %575 = vmatprep.subr.mxu0 0.0
  %576 = vmatpush1.msra.mxu0 0.0
  %577 = vmatprep.subr.mxu0 0.0
  %578 = vmatpush1.msra.mxu0 0.0
  %579 = vmatprep.subr.mxu0 0.0
  %580 = vmatpush1.msra.mxu0 0.0
  %581 = vmatprep.subr.mxu0 0.0
  %582 = vmatpush1.msra.mxu0 0.0
  %583 = vmatprep.subr.mxu0 0.0
  %584 = vmatpush1.msra.mxu0 0.0
  %585 = vmatprep.subr.mxu0 0.0
  %586 = vmatpush1.msra.mxu0 0.0
  %587 = vmatprep.subr.mxu0 0.0
  %588 = vmatpush1.msra.mxu0 0.0
  %589 = vmatprep.subr.mxu0 0.0
  %590 = vmatpush1.msra.mxu0 0.0
  %591 = vmatprep.subr.mxu0 0.0
  %592 = vmatpush1.msra.mxu0 0.0
  %593 = vmatprep.subr.mxu0 0.0
  %594 = vmatpush1.msra.mxu0 0.0
  %595 = vmatprep.subr.mxu0 0.0
  %596 = vmatpush1.msra.mxu0 0.0
  %597 = vmatprep.subr.mxu0 0.0
  %598 = vmatpush1.msra.mxu0 0.0
  %599 = vmatprep.subr.mxu0 0.0
  %600 = vmatpush1.msra.mxu0 0.0
  %601 = vmatprep.subr.mxu0 0.0
  %602 = vmatpush1.msra.mxu0 0.0
  %603 = vmatprep.subr.mxu0 0.0
  %604 = vmatpush1.msra.mxu0 0.0
  %605 = vmatprep.subr.mxu0 0.0
  %606 = vmatpush1.msra.mxu0 0.0
  %607 = vmatprep.subr.mxu0 0.0
  %608 = vmatpush1.msra.mxu0 0.0
  %609 = vmatprep.subr.mxu0 0.0
  %610 = vmatpush1.msra.mxu0 0.0
  %611 = vmatprep.subr.mxu0 0.0
  %612 = vmatpush1.msra.mxu0 0.0
  %613 = vmatprep.subr.mxu0 0.0
  %614 = vmatpush1.msra.mxu0 0.0
  %615 = vmatprep.subr.mxu0 0.0
  %616 = vmatpush1.msra.mxu0 0.0
  %617 = vmatprep.subr.mxu0 0.0
  %618 = vmatpush1.msra.mxu0 0.0
  %619 = vmatprep.mubr.f32.mxu0 0.0
  %620 = vmatmul.mubr.f32.gmra.mrb[0].mxu0 %v553
  %v621 = vpop.f32.mrb[0].mxu0
  %v622 = vadd.f32 0.0, %v621
  %v623 = vpop.f32.mrb[0].mxu0
  %624 = vdwg.mxu0
  %v625 = vadd.f32 %v552, %v622
  %v626 = vxor.u32 %v625, 2147483648
  %v627 = vmul.f32 %v626, 1.442695
  %v628 = vpow.pop %v627
  %v629 = vadd.f32 %v628, 1.0
  %v630 = vrcp.pop %v629
  %v631 = vmul.f32 1.0, %v630
  %v632 = vtanh.pop %v625
  %v633 = vmul.f32 %v631, %v538
  %635 = vrot.lane.b32.xlu0 %v632, 32
  %v636 = vpop.permute.xlu0 %635
  %v638 = vmul.f32 %v631, %v636
  %640 = vrot.lane.b32.xlu0 %v638, 32
  %v641 = vpop.permute.xlu0 %640
  %v643 = vadd.f32 %v633, %v641
  %v644 = vtanh.pop %v643
  %646 = vrot.lane.b32.xlu0 %v644, 32
  %v647 = vpop.permute.xlu0 %646
  %v649 = vmul.f32 %v631, %v647
  %651 = vrot.lane.b32.xlu0 %v649, 64
  %v652 = vpop.permute.xlu0 %651
  %s654 = scalar_lea.vmem [#allocation2], 40
  %655 = vst.msk [vmem:[%s654] sm:$0xff] %vm27, %v652
  %s656 = scalar_lea.vmem %s0, 48
  %v657 = vld [vmem:[%s656] sm:$0xff]
  %v658 = vsel %vm27, %v652, 0
  %660 = vmatprep.subr.mxu0 0.0
  %661 = vmatpush1.msra.mxu0 %v22
  %662 = vmatprep.subr.mxu0 0.0
  %663 = vmatpush1.msra.mxu0 %v23
  %664 = vmatprep.subr.mxu0 0.0
  %665 = vmatpush1.msra.mxu0 %v24
  %666 = vmatprep.subr.mxu0 0.0
  %667 = vmatpush1.msra.mxu0 %v25
  %668 = vmatprep.subr.mxu0 0.0
  %669 = vmatpush1.msra.mxu0 0.0
  %670 = vmatprep.subr.mxu0 0.0
  %671 = vmatpush1.msra.mxu0 0.0
  %672 = vmatprep.subr.mxu0 0.0
  %673 = vmatpush1.msra.mxu0 0.0
  %674 = vmatprep.subr.mxu0 0.0
  %675 = vmatpush1.msra.mxu0 0.0
  %676 = vmatprep.subr.mxu0 0.0
  %677 = vmatpush1.msra.mxu0 0.0
  %678 = vmatprep.subr.mxu0 0.0
  %679 = vmatpush1.msra.mxu0 0.0
  %680 = vmatprep.subr.mxu0 0.0
  %681 = vmatpush1.msra.mxu0 0.0
  %682 = vmatprep.subr.mxu0 0.0
  %683 = vmatpush1.msra.mxu0 0.0
  %684 = vmatprep.subr.mxu0 0.0
  %685 = vmatpush1.msra.mxu0 0.0
  %686 = vmatprep.subr.mxu0 0.0
  %687 = vmatpush1.msra.mxu0 0.0
  %688 = vmatprep.subr.mxu0 0.0
  %689 = vmatpush1.msra.mxu0 0.0
  %690 = vmatprep.subr.mxu0 0.0
  %691 = vmatpush1.msra.mxu0 0.0
  %692 = vmatprep.subr.mxu0 0.0
  %693 = vmatpush1.msra.mxu0 0.0
  %694 = vmatprep.subr.mxu0 0.0
  %695 = vmatpush1.msra.mxu0 0.0
  %696 = vmatprep.subr.mxu0 0.0
  %697 = vmatpush1.msra.mxu0 0.0
  %698 = vmatprep.subr.mxu0 0.0
  %699 = vmatpush1.msra.mxu0 0.0
  %700 = vmatprep.subr.mxu0 0.0
  %701 = vmatpush1.msra.mxu0 0.0
  %702 = vmatprep.subr.mxu0 0.0
  %703 = vmatpush1.msra.mxu0 0.0
  %704 = vmatprep.subr.mxu0 0.0
  %705 = vmatpush1.msra.mxu0 0.0
  %706 = vmatprep.subr.mxu0 0.0
  %707 = vmatpush1.msra.mxu0 0.0
  %708 = vmatprep.subr.mxu0 0.0
  %709 = vmatpush1.msra.mxu0 0.0
  %710 = vmatprep.subr.mxu0 0.0
  %711 = vmatpush1.msra.mxu0 0.0
  %712 = vmatprep.subr.mxu0 0.0
  %713 = vmatpush1.msra.mxu0 0.0
  %714 = vmatprep.subr.mxu0 0.0
  %715 = vmatpush1.msra.mxu0 0.0
  %716 = vmatprep.subr.mxu0 0.0
  %717 = vmatpush1.msra.mxu0 0.0
  %718 = vmatprep.subr.mxu0 0.0
  %719 = vmatpush1.msra.mxu0 0.0
  %720 = vmatprep.subr.mxu0 0.0
  %721 = vmatpush1.msra.mxu0 0.0
  %722 = vmatprep.subr.mxu0 0.0
  %723 = vmatpush1.msra.mxu0 0.0
  %724 = vmatprep.mubr.f32.mxu0 0.0
  %725 = vmatmul.mubr.f32.gmra.mrb[0].mxu0 %v658
  %v726 = vpop.f32.mrb[0].mxu0
  %v727 = vadd.f32 0.0, %v726
  %v728 = vpop.f32.mrb[0].mxu0
  %729 = vdwg.mxu0
  %v730 = vadd.f32 %v657, %v727
  %v731 = vxor.u32 %v730, 2147483648
  %v732 = vmul.f32 %v731, 1.442695
  %v733 = vpow.pop %v732
  %v734 = vadd.f32 %v733, 1.0
  %v735 = vrcp.pop %v734
  %v736 = vmul.f32 1.0, %v735
  %v737 = vtanh.pop %v730
  %v738 = vmul.f32 %v736, %v643
  %740 = vrot.lane.b32.xlu0 %v737, 32
  %v741 = vpop.permute.xlu0 %740
  %v743 = vmul.f32 %v736, %v741
  %745 = vrot.lane.b32.xlu0 %v743, 32
  %v746 = vpop.permute.xlu0 %745
  %v748 = vadd.f32 %v738, %v746
  %v749 = vtanh.pop %v748
  %751 = vrot.lane.b32.xlu0 %v749, 32
  %v752 = vpop.permute.xlu0 %751
  %v754 = vmul.f32 %v736, %v752
  %756 = vrot.lane.b32.xlu0 %v754, 64
  %v757 = vpop.permute.xlu0 %756
  %s759 = scalar_lea.vmem [#allocation2], 48
  %760 = vst.msk [vmem:[%s759] sm:$0xff] %vm27, %v757
  %s761 = scalar_lea.vmem %s0, 56
  %v762 = vld [vmem:[%s761] sm:$0xff]
  %v763 = vsel %vm27, %v757, 0
  %765 = vmatprep.subr.mxu0 0.0
  %766 = vmatpush1.msra.mxu0 %v22
  %767 = vmatprep.subr.mxu0 0.0
  %768 = vmatpush1.msra.mxu0 %v23
  %769 = vmatprep.subr.mxu0 0.0
  %770 = vmatpush1.msra.mxu0 %v24
  %771 = vmatprep.subr.mxu0 0.0
  %772 = vmatpush1.msra.mxu0 %v25
  %773 = vmatprep.subr.mxu0 0.0
  %774 = vmatpush1.msra.mxu0 0.0
  %775 = vmatprep.subr.mxu0 0.0
  %776 = vmatpush1.msra.mxu0 0.0
  %777 = vmatprep.subr.mxu0 0.0
  %778 = vmatpush1.msra.mxu0 0.0
  %779 = vmatprep.subr.mxu0 0.0
  %780 = vmatpush1.msra.mxu0 0.0
  %781 = vmatprep.subr.mxu0 0.0
  %782 = vmatpush1.msra.mxu0 0.0
  %783 = vmatprep.subr.mxu0 0.0
  %784 = vmatpush1.msra.mxu0 0.0
  %785 = vmatprep.subr.mxu0 0.0
  %786 = vmatpush1.msra.mxu0 0.0
  %787 = vmatprep.subr.mxu0 0.0
  %788 = vmatpush1.msra.mxu0 0.0
  %789 = vmatprep.subr.mxu0 0.0
  %790 = vmatpush1.msra.mxu0 0.0
  %791 = vmatprep.subr.mxu0 0.0
  %792 = vmatpush1.msra.mxu0 0.0
  %793 = vmatprep.subr.mxu0 0.0
  %794 = vmatpush1.msra.mxu0 0.0
  %795 = vmatprep.subr.mxu0 0.0
  %796 = vmatpush1.msra.mxu0 0.0
  %797 = vmatprep.subr.mxu0 0.0
  %798 = vmatpush1.msra.mxu0 0.0
  %799 = vmatprep.subr.mxu0 0.0
  %800 = vmatpush1.msra.mxu0 0.0
  %801 = vmatprep.subr.mxu0 0.0
  %802 = vmatpush1.msra.mxu0 0.0
  %803 = vmatprep.subr.mxu0 0.0
  %804 = vmatpush1.msra.mxu0 0.0
  %805 = vmatprep.subr.mxu0 0.0
  %806 = vmatpush1.msra.mxu0 0.0
  %807 = vmatprep.subr.mxu0 0.0
  %808 = vmatpush1.msra.mxu0 0.0
  %809 = vmatprep.subr.mxu0 0.0
  %810 = vmatpush1.msra.mxu0 0.0
  %811 = vmatprep.subr.mxu0 0.0
  %812 = vmatpush1.msra.mxu0 0.0
  %813 = vmatprep.subr.mxu0 0.0
  %814 = vmatpush1.msra.mxu0 0.0
  %815 = vmatprep.subr.mxu0 0.0
  %816 = vmatpush1.msra.mxu0 0.0
  %817 = vmatprep.subr.mxu0 0.0
  %818 = vmatpush1.msra.mxu0 0.0
  %819 = vmatprep.subr.mxu0 0.0
  %820 = vmatpush1.msra.mxu0 0.0
  %821 = vmatprep.subr.mxu0 0.0
  %822 = vmatpush1.msra.mxu0 0.0
  %823 = vmatprep.subr.mxu0 0.0
  %824 = vmatpush1.msra.mxu0 0.0
  %825 = vmatprep.subr.mxu0 0.0
  %826 = vmatpush1.msra.mxu0 0.0
  %827 = vmatprep.subr.mxu0 0.0
  %828 = vmatpush1.msra.mxu0 0.0
  %829 = vmatprep.mubr.f32.mxu0 0.0
  %830 = vmatmul.mubr.f32.gmra.mrb[0].mxu0 %v763
  %v831 = vpop.f32.mrb[0].mxu0
  %v832 = vadd.f32 0.0, %v831
  %v833 = vpop.f32.mrb[0].mxu0
  %834 = vdwg.mxu0
  %v835 = vadd.f32 %v762, %v832
  %v836 = vxor.u32 %v835, 2147483648
  %v837 = vmul.f32 %v836, 1.442695
  %v838 = vpow.pop %v837
  %v839 = vadd.f32 %v838, 1.0
  %v840 = vrcp.pop %v839
  %v841 = vmul.f32 1.0, %v840
  %v842 = vtanh.pop %v835
  %v843 = vmul.f32 %v841, %v748
  %845 = vrot.lane.b32.xlu0 %v842, 32
  %v846 = vpop.permute.xlu0 %845
  %v848 = vmul.f32 %v841, %v846
  %850 = vrot.lane.b32.xlu0 %v848, 32
  %v851 = vpop.permute.xlu0 %850
  %v853 = vadd.f32 %v843, %v851
  %v854 = vtanh.pop %v853
  %856 = vrot.lane.b32.xlu0 %v854, 32
  %v857 = vpop.permute.xlu0 %856
  %v859 = vmul.f32 %v841, %v857
  %861 = vrot.lane.b32.xlu0 %v859, 64
  %v862 = vpop.permute.xlu0 %861
  %s864 = scalar_lea.vmem [#allocation2], 56
  %865 = vst.msk [vmem:[%s864] sm:$0xff] %vm27, %v862
  %866 = vst.msk [vmem:[%s5] sm:$0xff] %vm27, %v862
  %868 = vrot.lane.b32.xlu0 %v853, 96
  %v869 = vpop.permute.xlu0 %868
  %871 = vst.msk [vmem:[%s6] sm:$0xff] %vm27, %v869
  %v872 = vld [vmem:[#allocation2] sm:$0xff]
  %v873 = vld [vmem:[#allocation2 + $0x8] sm:$0xff]
  %v874 = vld [vmem:[#allocation2 + $0x10] sm:$0xff]
  %v875 = vld [vmem:[#allocation2 + $0x18] sm:$0xff]
  %v876 = vld [vmem:[#allocation2 + $0x20] sm:$0xff]
  %v877 = vld [vmem:[#allocation2 + $0x28] sm:$0xff]
  %v878 = vld [vmem:[#allocation2 + $0x30] sm:$0xff]
  %v879 = vld [vmem:[#allocation2 + $0x38] sm:$0xff]
  %v880 = vld [vmem:[%s2] sm:$0xff]
  %v881 = vld [vmem:[%s2 + $0x8] sm:$0xff]
  %v882 = vld [vmem:[%s2 + $0x10] sm:$0xff]
  %v883 = vld [vmem:[%s2 + $0x18] sm:$0xff]
  %v884 = vld [vmem:[%s4] sm:$0x1]
  %v886 = vlaneseq
  %v887 = vshrl.u32 %v886, 7
  %v888 = vsub.s32 0, %v887
  %v889 = vrot.slane %v884, %v888
  %v892 = vsel %vm27, %v872, 0
  %v895 = vsel %vm27, %v873, 0
  %v898 = vsel %vm27, %v874, 0
  %v901 = vsel %vm27, %v875, 0
  %v904 = vsel %vm27, %v876, 0
  %v907 = vsel %vm27, %v877, 0
  %v910 = vsel %vm27, %v878, 0
  %v913 = vsel %vm27, %v879, 0
  %915 = vmatprep.subr.mxu0 0.0
  %916 = vmatpush1.msra.mxu0 %v880
  %917 = vmatprep.subr.mxu0 0.0
  %918 = vmatpush1.msra.mxu0 %v881
  %919 = vmatprep.subr.mxu0 0.0
  %920 = vmatpush1.msra.mxu0 %v882
  %921 = vmatprep.subr.mxu0 0.0
  %922 = vmatpush1.msra.mxu0 %v883
  %923 = vmatprep.subr.mxu0 0.0
  %924 = vmatpush1.msra.mxu0 0.0
  %925 = vmatprep.subr.mxu0 0.0
  %926 = vmatpush1.msra.mxu0 0.0
  %927 = vmatprep.subr.mxu0 0.0
  %928 = vmatpush1.msra.mxu0 0.0
  %929 = vmatprep.subr.mxu0 0.0
  %930 = vmatpush1.msra.mxu0 0.0
  %931 = vmatprep.subr.mxu0 0.0
  %932 = vmatpush1.msra.mxu0 0.0
  %933 = vmatprep.subr.mxu0 0.0
  %934 = vmatpush1.msra.mxu0 0.0
  %935 = vmatprep.subr.mxu0 0.0
  %936 = vmatpush1.msra.mxu0 0.0
  %937 = vmatprep.subr.mxu0 0.0
  %938 = vmatpush1.msra.mxu0 0.0
  %939 = vmatprep.subr.mxu0 0.0
  %940 = vmatpush1.msra.mxu0 0.0
  %941 = vmatprep.subr.mxu0 0.0
  %942 = vmatpush1.msra.mxu0 0.0
  %943 = vmatprep.subr.mxu0 0.0
  %944 = vmatpush1.msra.mxu0 0.0
  %945 = vmatprep.subr.mxu0 0.0
  %946 = vmatpush1.msra.mxu0 0.0
  %947 = vmatprep.subr.mxu0 0.0
  %948 = vmatpush1.msra.mxu0 0.0
  %949 = vmatprep.subr.mxu0 0.0
  %950 = vmatpush1.msra.mxu0 0.0
  %951 = vmatprep.subr.mxu0 0.0
  %952 = vmatpush1.msra.mxu0 0.0
  %953 = vmatprep.subr.mxu0 0.0
  %954 = vmatpush1.msra.mxu0 0.0
  %955 = vmatprep.subr.mxu0 0.0
  %956 = vmatpush1.msra.mxu0 0.0
  %957 = vmatprep.subr.mxu0 0.0
  %958 = vmatpush1.msra.mxu0 0.0
  %959 = vmatprep.subr.mxu0 0.0
  %960 = vmatpush1.msra.mxu0 0.0
  %961 = vmatprep.subr.mxu0 0.0
  %962 = vmatpush1.msra.mxu0 0.0
  %963 = vmatprep.subr.mxu0 0.0
  %964 = vmatpush1.msra.mxu0 0.0
  %965 = vmatprep.subr.mxu0 0.0
  %966 = vmatpush1.msra.mxu0 0.0
  %967 = vmatprep.subr.mxu0 0.0
  %968 = vmatpush1.msra.mxu0 0.0
  %969 = vmatprep.subr.mxu0 0.0
  %970 = vmatpush1.msra.mxu0 0.0
  %971 = vmatprep.subr.mxu0 0.0
  %972 = vmatpush1.msra.mxu0 0.0
  %973 = vmatprep.subr.mxu0 0.0
  %974 = vmatpush1.msra.mxu0 0.0
  %975 = vmatprep.subr.mxu0 0.0
  %976 = vmatpush1.msra.mxu0 0.0
  %977 = vmatprep.subr.mxu0 0.0
  %978 = vmatpush1.msra.mxu0 0.0
  %979 = vmatprep.mubr.f32.mxu0 0.0
  %980 = vmatmul.mubr.f32.gmra.mrb[0].mxu0 %v892
  %v981 = vpop.f32.mrb[0].mxu0
  %v982 = vadd.f32 %v889, %v981
  %v983 = vpop.f32.mrb[0].mxu0
  %984 = vmatprep.mubr.f32.mxu0 0.0
  %985 = vmatmul.mubr.f32.gmra.mrb[0].mxu0 %v895
  %v986 = vpop.f32.mrb[0].mxu0
  %v987 = vadd.f32 %v889, %v986
  %v988 = vpop.f32.mrb[0].mxu0
  %989 = vmatprep.mubr.f32.mxu0 0.0
  %990 = vmatmul.mubr.f32.gmra.mrb[0].mxu0 %v898
  %v991 = vpop.f32.mrb[0].mxu0
  %v992 = vadd.f32 %v889, %v991
  %v993 = vpop.f32.mrb[0].mxu0
  %994 = vmatprep.mubr.f32.mxu0 0.0
  %995 = vmatmul.mubr.f32.gmra.mrb[0].mxu0 %v901
  %v996 = vpop.f32.mrb[0].mxu0
  %v997 = vadd.f32 %v889, %v996
  %v998 = vpop.f32.mrb[0].mxu0
  %999 = vmatprep.mubr.f32.mxu0 0.0
  %1000 = vmatmul.mubr.f32.gmra.mrb[0].mxu0 %v904
  %v1001 = vpop.f32.mrb[0].mxu0
  %v1002 = vadd.f32 %v889, %v1001
  %v1003 = vpop.f32.mrb[0].mxu0
  %1004 = vmatprep.mubr.f32.mxu0 0.0
  %1005 = vmatmul.mubr.f32.gmra.mrb[0].mxu0 %v907
  %v1006 = vpop.f32.mrb[0].mxu0
  %v1007 = vadd.f32 %v889, %v1006
  %v1008 = vpop.f32.mrb[0].mxu0
  %1009 = vmatprep.mubr.f32.mxu0 0.0
  %1010 = vmatmul.mubr.f32.gmra.mrb[0].mxu0 %v910
  %v1011 = vpop.f32.mrb[0].mxu0
  %v1012 = vadd.f32 %v889, %v1011
  %v1013 = vpop.f32.mrb[0].mxu0
  %1014 = vmatprep.mubr.f32.mxu0 0.0
  %1015 = vmatmul.mubr.f32.gmra.mrb[0].mxu0 %v913
  %v1016 = vpop.f32.mrb[0].mxu0
  %v1017 = vadd.f32 %v889, %v1016
  %v1018 = vpop.f32.mrb[0].mxu0
  %1019 = vdwg.mxu0
  %1020 = vst [vmem:[#allocation3] sm:$0xff] %v982
  %1021 = vst [vmem:[#allocation3 + $0x8] sm:$0xff] %v987
  %1022 = vst [vmem:[#allocation3 + $0x10] sm:$0xff] %v992
  %1023 = vst [vmem:[#allocation3 + $0x18] sm:$0xff] %v997
  %1024 = vst [vmem:[#allocation3 + $0x20] sm:$0xff] %v1002
  %1025 = vst [vmem:[#allocation3 + $0x28] sm:$0xff] %v1007
  %1026 = vst [vmem:[#allocation3 + $0x30] sm:$0xff] %v1012
  %1027 = vst [vmem:[#allocation3 + $0x38] sm:$0xff] %v1017
  %v1028 = vld [vmem:[%s3] sm:$0xff]
  %v1029 = vld [vmem:[%s3 + $0x8] sm:$0xff]
  %v1030 = vld [vmem:[%s3 + $0x10] sm:$0xff]
  %v1031 = vld [vmem:[%s3 + $0x18] sm:$0xff]
  %v1032 = vld [vmem:[#allocation3] sm:$0xff]
  %1033 = vmatprep.subr.mxu0 0.0
  %1034 = vmatpush1.msra.mxu0 %v1028
  %1035 = vmatprep.subr.mxu0 0.0
  %1036 = vmatpush1.msra.mxu0 %v1029
  %1037 = vmatprep.subr.mxu0 0.0
  %1038 = vmatpush1.msra.mxu0 %v1030
  %1039 = vmatprep.subr.mxu0 0.0
  %1040 = vmatpush1.msra.mxu0 %v1031
  %1041 = vmatprep.subr.mxu0 0.0
  %1042 = vmatpush1.msra.mxu0 0.0
  %1043 = vmatprep.subr.mxu0 0.0
  %1044 = vmatpush1.msra.mxu0 0.0
  %1045 = vmatprep.subr.mxu0 0.0
  %1046 = vmatpush1.msra.mxu0 0.0
  %1047 = vmatprep.subr.mxu0 0.0
  %1048 = vmatpush1.msra.mxu0 0.0
  %1049 = vmatprep.subr.mxu0 0.0
  %1050 = vmatpush1.msra.mxu0 0.0
  %1051 = vmatprep.subr.mxu0 0.0
  %1052 = vmatpush1.msra.mxu0 0.0
  %1053 = vmatprep.subr.mxu0 0.0
  %1054 = vmatpush1.msra.mxu0 0.0
  %1055 = vmatprep.subr.mxu0 0.0
  %1056 = vmatpush1.msra.mxu0 0.0
  %1057 = vmatprep.subr.mxu0 0.0
  %1058 = vmatpush1.msra.mxu0 0.0
  %1059 = vmatprep.subr.mxu0 0.0
  %1060 = vmatpush1.msra.mxu0 0.0
  %1061 = vmatprep.subr.mxu0 0.0
  %1062 = vmatpush1.msra.mxu0 0.0
  %1063 = vmatprep.subr.mxu0 0.0
  %1064 = vmatpush1.msra.mxu0 0.0
  %1065 = vmatprep.subr.mxu0 0.0
  %1066 = vmatpush1.msra.mxu0 0.0
  %1067 = vmatprep.subr.mxu0 0.0
  %1068 = vmatpush1.msra.mxu0 0.0
  %1069 = vmatprep.subr.mxu0 0.0
  %1070 = vmatpush1.msra.mxu0 0.0
  %1071 = vmatprep.subr.mxu0 0.0
  %1072 = vmatpush1.msra.mxu0 0.0
  %1073 = vmatprep.subr.mxu0 0.0
  %1074 = vmatpush1.msra.mxu0 0.0
  %1075 = vmatprep.subr.mxu0 0.0
  %1076 = vmatpush1.msra.mxu0 0.0
  %1077 = vmatprep.subr.mxu0 0.0
  %1078 = vmatpush1.msra.mxu0 0.0
  %1079 = vmatprep.subr.mxu0 0.0
  %1080 = vmatpush1.msra.mxu0 0.0
  %1081 = vmatprep.subr.mxu0 0.0
  %1082 = vmatpush1.msra.mxu0 0.0
  %1083 = vmatprep.subr.mxu0 0.0
  %1084 = vmatpush1.msra.mxu0 0.0
  %1085 = vmatprep.subr.mxu0 0.0
  %1086 = vmatpush1.msra.mxu0 0.0
  %1087 = vmatprep.subr.mxu0 0.0
  %1088 = vmatpush1.msra.mxu0 0.0
  %1089 = vmatprep.subr.mxu0 0.0
  %1090 = vmatpush1.msra.mxu0 0.0
  %1091 = vmatprep.subr.mxu0 0.0
  %1092 = vmatpush1.msra.mxu0 0.0
  %1093 = vmatprep.subr.mxu0 0.0
  %1094 = vmatpush1.msra.mxu0 0.0
  %1095 = vmatprep.subr.mxu0 0.0
  %1096 = vmatpush1.msra.mxu0 0.0
  %1097 = vmatprep.mubr.f32.mxu0 0.0
  %1098 = vmatmul.mubr.f32.gmra.mrb[0].mxu0 %v29
  %v1099 = vpop.f32.mrb[0].mxu0
  %v1100 = vadd.f32 0.0, %v1099
  %v1101 = vpop.f32.mrb[0].mxu0
  %1102 = vdwg.mxu0
  %v1103 = vadd.f32 %v1032, %v1100
  %v1104 = vxor.u32 %v1103, 2147483648
  %v1105 = vmul.f32 %v1104, 1.442695
  %v1106 = vpow.pop %v1105
  %v1107 = vadd.f32 %v1106, 1.0
  %v1108 = vrcp.pop %v1107
  %v1109 = vmul.f32 1.0, %v1108
  %v1110 = vtanh.pop %v1103
  %v1111 = vmul.f32 %v1109, 0.0
  %1113 = vrot.lane.b32.xlu0 %v1110, 32
  %v1114 = vpop.permute.xlu0 %1113
  %v1116 = vmul.f32 %v1109, %v1114
  %1118 = vrot.lane.b32.xlu0 %v1116, 32
  %v1119 = vpop.permute.xlu0 %1118
  %v1121 = vadd.f32 %v1111, %v1119
  %v1122 = vtanh.pop %v1121
  %1124 = vrot.lane.b32.xlu0 %v1122, 32
  %v1125 = vpop.permute.xlu0 %1124
  %v1127 = vmul.f32 %v1109, %v1125
  %1129 = vrot.lane.b32.xlu0 %v1127, 64
  %v1130 = vpop.permute.xlu0 %1129
  %1132 = vst.msk [vmem:[#allocation2] sm:$0xff] %vm27, %v1130
  %s1133 = scalar_lea.vmem [#allocation3], 8
  %v1134 = vld [vmem:[%s1133] sm:$0xff]
  %v1135 = vsel %vm27, %v1130, 0
  %1137 = vmatprep.subr.mxu0 0.0
  %1138 = vmatpush1.msra.mxu0 %v1028
  %1139 = vmatprep.subr.mxu0 0.0
  %1140 = vmatpush1.msra.mxu0 %v1029
  %1141 = vmatprep.subr.mxu0 0.0
  %1142 = vmatpush1.msra.mxu0 %v1030
  %1143 = vmatprep.subr.mxu0 0.0
  %1144 = vmatpush1.msra.mxu0 %v1031
  %1145 = vmatprep.subr.mxu0 0.0
  %1146 = vmatpush1.msra.mxu0 0.0
  %1147 = vmatprep.subr.mxu0 0.0
  %1148 = vmatpush1.msra.mxu0 0.0
  %1149 = vmatprep.subr.mxu0 0.0
  %1150 = vmatpush1.msra.mxu0 0.0
  %1151 = vmatprep.subr.mxu0 0.0
  %1152 = vmatpush1.msra.mxu0 0.0
  %1153 = vmatprep.subr.mxu0 0.0
  %1154 = vmatpush1.msra.mxu0 0.0
  %1155 = vmatprep.subr.mxu0 0.0
  %1156 = vmatpush1.msra.mxu0 0.0
  %1157 = vmatprep.subr.mxu0 0.0
  %1158 = vmatpush1.msra.mxu0 0.0
  %1159 = vmatprep.subr.mxu0 0.0
  %1160 = vmatpush1.msra.mxu0 0.0
  %1161 = vmatprep.subr.mxu0 0.0
  %1162 = vmatpush1.msra.mxu0 0.0
  %1163 = vmatprep.subr.mxu0 0.0
  %1164 = vmatpush1.msra.mxu0 0.0
  %1165 = vmatprep.subr.mxu0 0.0
  %1166 = vmatpush1.msra.mxu0 0.0
  %1167 = vmatprep.subr.mxu0 0.0
  %1168 = vmatpush1.msra.mxu0 0.0
  %1169 = vmatprep.subr.mxu0 0.0
  %1170 = vmatpush1.msra.mxu0 0.0
  %1171 = vmatprep.subr.mxu0 0.0
  %1172 = vmatpush1.msra.mxu0 0.0
  %1173 = vmatprep.subr.mxu0 0.0
  %1174 = vmatpush1.msra.mxu0 0.0
  %1175 = vmatprep.subr.mxu0 0.0
  %1176 = vmatpush1.msra.mxu0 0.0
  %1177 = vmatprep.subr.mxu0 0.0
  %1178 = vmatpush1.msra.mxu0 0.0
  %1179 = vmatprep.subr.mxu0 0.0
  %1180 = vmatpush1.msra.mxu0 0.0
  %1181 = vmatprep.subr.mxu0 0.0
  %1182 = vmatpush1.msra.mxu0 0.0
  %1183 = vmatprep.subr.mxu0 0.0
  %1184 = vmatpush1.msra.mxu0 0.0
  %1185 = vmatprep.subr.mxu0 0.0
  %1186 = vmatpush1.msra.mxu0 0.0
  %1187 = vmatprep.subr.mxu0 0.0
  %1188 = vmatpush1.msra.mxu0 0.0
  %1189 = vmatprep.subr.mxu0 0.0
  %1190 = vmatpush1.msra.mxu0 0.0
  %1191 = vmatprep.subr.mxu0 0.0
  %1192 = vmatpush1.msra.mxu0 0.0
  %1193 = vmatprep.subr.mxu0 0.0
  %1194 = vmatpush1.msra.mxu0 0.0
  %1195 = vmatprep.subr.mxu0 0.0
  %1196 = vmatpush1.msra.mxu0 0.0
  %1197 = vmatprep.subr.mxu0 0.0
  %1198 = vmatpush1.msra.mxu0 0.0
  %1199 = vmatprep.subr.mxu0 0.0
  %1200 = vmatpush1.msra.mxu0 0.0
  %1201 = vmatprep.mubr.f32.mxu0 0.0
  %1202 = vmatmul.mubr.f32.gmra.mrb[0].mxu0 %v1135
  %v1203 = vpop.f32.mrb[0].mxu0
  %v1204 = vadd.f32 0.0, %v1203
  %v1205 = vpop.f32.mrb[0].mxu0
  %1206 = vdwg.mxu0
  %v1207 = vadd.f32 %v1134, %v1204
  %v1208 = vxor.u32 %v1207, 2147483648
  %v1209 = vmul.f32 %v1208, 1.442695
  %v1210 = vpow.pop %v1209
  %v1211 = vadd.f32 %v1210, 1.0
  %v1212 = vrcp.pop %v1211
  %v1213 = vmul.f32 1.0, %v1212
  %v1214 = vtanh.pop %v1207
  %v1215 = vmul.f32 %v1213, %v1121
  %1217 = vrot.lane.b32.xlu0 %v1214, 32
  %v1218 = vpop.permute.xlu0 %1217
  %v1220 = vmul.f32 %v1213, %v1218
  %1222 = vrot.lane.b32.xlu0 %v1220, 32
  %v1223 = vpop.permute.xlu0 %1222
  %v1225 = vadd.f32 %v1215, %v1223
  %v1226 = vtanh.pop %v1225
  %1228 = vrot.lane.b32.xlu0 %v1226, 32
  %v1229 = vpop.permute.xlu0 %1228
  %v1231 = vmul.f32 %v1213, %v1229
  %1233 = vrot.lane.b32.xlu0 %v1231, 64
  %v1234 = vpop.permute.xlu0 %1233
  %1236 = vst.msk [vmem:[%s234] sm:$0xff] %vm27, %v1234
  %s1237 = scalar_lea.vmem [#allocation3], 16
  %v1238 = vld [vmem:[%s1237] sm:$0xff]
  %v1239 = vsel %vm27, %v1234, 0
  %1241 = vmatprep.subr.mxu0 0.0
  %1242 = vmatpush1.msra.mxu0 %v1028
  %1243 = vmatprep.subr.mxu0 0.0
  %1244 = vmatpush1.msra.mxu0 %v1029
  %1245 = vmatprep.subr.mxu0 0.0
  %1246 = vmatpush1.msra.mxu0 %v1030
  %1247 = vmatprep.subr.mxu0 0.0
  %1248 = vmatpush1.msra.mxu0 %v1031
  %1249 = vmatprep.subr.mxu0 0.0
  %1250 = vmatpush1.msra.mxu0 0.0
  %1251 = vmatprep.subr.mxu0 0.0
  %1252 = vmatpush1.msra.mxu0 0.0
  %1253 = vmatprep.subr.mxu0 0.0
  %1254 = vmatpush1.msra.mxu0 0.0
  %1255 = vmatprep.subr.mxu0 0.0
  %1256 = vmatpush1.msra.mxu0 0.0
  %1257 = vmatprep.subr.mxu0 0.0
  %1258 = vmatpush1.msra.mxu0 0.0
  %1259 = vmatprep.subr.mxu0 0.0
  %1260 = vmatpush1.msra.mxu0 0.0
  %1261 = vmatprep.subr.mxu0 0.0
  %1262 = vmatpush1.msra.mxu0 0.0
  %1263 = vmatprep.subr.mxu0 0.0
  %1264 = vmatpush1.msra.mxu0 0.0
  %1265 = vmatprep.subr.mxu0 0.0
  %1266 = vmatpush1.msra.mxu0 0.0
  %1267 = vmatprep.subr.mxu0 0.0
  %1268 = vmatpush1.msra.mxu0 0.0
  %1269 = vmatprep.subr.mxu0 0.0
  %1270 = vmatpush1.msra.mxu0 0.0
  %1271 = vmatprep.subr.mxu0 0.0
  %1272 = vmatpush1.msra.mxu0 0.0
  %1273 = vmatprep.subr.mxu0 0.0
  %1274 = vmatpush1.msra.mxu0 0.0
  %1275 = vmatprep.subr.mxu0 0.0
  %1276 = vmatpush1.msra.mxu0 0.0
  %1277 = vmatprep.subr.mxu0 0.0
  %1278 = vmatpush1.msra.mxu0 0.0
  %1279 = vmatprep.subr.mxu0 0.0
  %1280 = vmatpush1.msra.mxu0 0.0
  %1281 = vmatprep.subr.mxu0 0.0
  %1282 = vmatpush1.msra.mxu0 0.0
  %1283 = vmatprep.subr.mxu0 0.0
  %1284 = vmatpush1.msra.mxu0 0.0
  %1285 = vmatprep.subr.mxu0 0.0
  %1286 = vmatpush1.msra.mxu0 0.0
  %1287 = vmatprep.subr.mxu0 0.0
  %1288 = vmatpush1.msra.mxu0 0.0
  %1289 = vmatprep.subr.mxu0 0.0
  %1290 = vmatpush1.msra.mxu0 0.0
  %1291 = vmatprep.subr.mxu0 0.0
  %1292 = vmatpush1.msra.mxu0 0.0
  %1293 = vmatprep.subr.mxu0 0.0
  %1294 = vmatpush1.msra.mxu0 0.0
  %1295 = vmatprep.subr.mxu0 0.0
  %1296 = vmatpush1.msra.mxu0 0.0
  %1297 = vmatprep.subr.mxu0 0.0
  %1298 = vmatpush1.msra.mxu0 0.0
  %1299 = vmatprep.subr.mxu0 0.0
  %1300 = vmatpush1.msra.mxu0 0.0
  %1301 = vmatprep.subr.mxu0 0.0
  %1302 = vmatpush1.msra.mxu0 0.0
  %1303 = vmatprep.subr.mxu0 0.0
  %1304 = vmatpush1.msra.mxu0 0.0
  %1305 = vmatprep.mubr.f32.mxu0 0.0
  %1306 = vmatmul.mubr.f32.gmra.mrb[0].mxu0 %v1239
  %v1307 = vpop.f32.mrb[0].mxu0
  %v1308 = vadd.f32 0.0, %v1307
  %v1309 = vpop.f32.mrb[0].mxu0
  %1310 = vdwg.mxu0
  %v1311 = vadd.f32 %v1238, %v1308
  %v1312 = vxor.u32 %v1311, 2147483648
  %v1313 = vmul.f32 %v1312, 1.442695
  %v1314 = vpow.pop %v1313
  %v1315 = vadd.f32 %v1314, 1.0
  %v1316 = vrcp.pop %v1315
  %v1317 = vmul.f32 1.0, %v1316
  %v1318 = vtanh.pop %v1311
  %v1319 = vmul.f32 %v1317, %v1225
  %1321 = vrot.lane.b32.xlu0 %v1318, 32
  %v1322 = vpop.permute.xlu0 %1321
  %v1324 = vmul.f32 %v1317, %v1322
  %1326 = vrot.lane.b32.xlu0 %v1324, 32
  %v1327 = vpop.permute.xlu0 %1326
  %v1329 = vadd.f32 %v1319, %v1327
  %v1330 = vtanh.pop %v1329
  %1332 = vrot.lane.b32.xlu0 %v1330, 32
  %v1333 = vpop.permute.xlu0 %1332
  %v1335 = vmul.f32 %v1317, %v1333
  %1337 = vrot.lane.b32.xlu0 %v1335, 64
  %v1338 = vpop.permute.xlu0 %1337
  %1340 = vst.msk [vmem:[%s339] sm:$0xff] %vm27, %v1338
  %s1341 = scalar_lea.vmem [#allocation3], 24
  %v1342 = vld [vmem:[%s1341] sm:$0xff]
  %v1343 = vsel %vm27, %v1338, 0
  %1345 = vmatprep.subr.mxu0 0.0
  %1346 = vmatpush1.msra.mxu0 %v1028
  %1347 = vmatprep.subr.mxu0 0.0
  %1348 = vmatpush1.msra.mxu0 %v1029
  %1349 = vmatprep.subr.mxu0 0.0
  %1350 = vmatpush1.msra.mxu0 %v1030
  %1351 = vmatprep.subr.mxu0 0.0
  %1352 = vmatpush1.msra.mxu0 %v1031
  %1353 = vmatprep.subr.mxu0 0.0
  %1354 = vmatpush1.msra.mxu0 0.0
  %1355 = vmatprep.subr.mxu0 0.0
  %1356 = vmatpush1.msra.mxu0 0.0
  %1357 = vmatprep.subr.mxu0 0.0
  %1358 = vmatpush1.msra.mxu0 0.0
  %1359 = vmatprep.subr.mxu0 0.0
  %1360 = vmatpush1.msra.mxu0 0.0
  %1361 = vmatprep.subr.mxu0 0.0
  %1362 = vmatpush1.msra.mxu0 0.0
  %1363 = vmatprep.subr.mxu0 0.0
  %1364 = vmatpush1.msra.mxu0 0.0
  %1365 = vmatprep.subr.mxu0 0.0
  %1366 = vmatpush1.msra.mxu0 0.0
  %1367 = vmatprep.subr.mxu0 0.0
  %1368 = vmatpush1.msra.mxu0 0.0
  %1369 = vmatprep.subr.mxu0 0.0
  %1370 = vmatpush1.msra.mxu0 0.0
  %1371 = vmatprep.subr.mxu0 0.0
  %1372 = vmatpush1.msra.mxu0 0.0
  %1373 = vmatprep.subr.mxu0 0.0
  %1374 = vmatpush1.msra.mxu0 0.0
  %1375 = vmatprep.subr.mxu0 0.0
  %1376 = vmatpush1.msra.mxu0 0.0
  %1377 = vmatprep.subr.mxu0 0.0
  %1378 = vmatpush1.msra.mxu0 0.0
  %1379 = vmatprep.subr.mxu0 0.0
  %1380 = vmatpush1.msra.mxu0 0.0
  %1381 = vmatprep.subr.mxu0 0.0
  %1382 = vmatpush1.msra.mxu0 0.0
  %1383 = vmatprep.subr.mxu0 0.0
  %1384 = vmatpush1.msra.mxu0 0.0
  %1385 = vmatprep.subr.mxu0 0.0
  %1386 = vmatpush1.msra.mxu0 0.0
  %1387 = vmatprep.subr.mxu0 0.0
  %1388 = vmatpush1.msra.mxu0 0.0
  %1389 = vmatprep.subr.mxu0 0.0
  %1390 = vmatpush1.msra.mxu0 0.0
  %1391 = vmatprep.subr.mxu0 0.0
  %1392 = vmatpush1.msra.mxu0 0.0
  %1393 = vmatprep.subr.mxu0 0.0
  %1394 = vmatpush1.msra.mxu0 0.0
  %1395 = vmatprep.subr.mxu0 0.0
  %1396 = vmatpush1.msra.mxu0 0.0
  %1397 = vmatprep.subr.mxu0 0.0
  %1398 = vmatpush1.msra.mxu0 0.0
  %1399 = vmatprep.subr.mxu0 0.0
  %1400 = vmatpush1.msra.mxu0 0.0
  %1401 = vmatprep.subr.mxu0 0.0
  %1402 = vmatpush1.msra.mxu0 0.0
  %1403 = vmatprep.subr.mxu0 0.0
  %1404 = vmatpush1.msra.mxu0 0.0
  %1405 = vmatprep.subr.mxu0 0.0
  %1406 = vmatpush1.msra.mxu0 0.0
  %1407 = vmatprep.subr.mxu0 0.0
  %1408 = vmatpush1.msra.mxu0 0.0
  %1409 = vmatprep.mubr.f32.mxu0 0.0
  %1410 = vmatmul.mubr.f32.gmra.mrb[0].mxu0 %v1343
  %v1411 = vpop.f32.mrb[0].mxu0
  %v1412 = vadd.f32 0.0, %v1411
  %v1413 = vpop.f32.mrb[0].mxu0
  %1414 = vdwg.mxu0
  %v1415 = vadd.f32 %v1342, %v1412
  %v1416 = vxor.u32 %v1415, 2147483648
  %v1417 = vmul.f32 %v1416, 1.442695
  %v1418 = vpow.pop %v1417
  %v1419 = vadd.f32 %v1418, 1.0
  %v1420 = vrcp.pop %v1419
  %v1421 = vmul.f32 1.0, %v1420
  %v1422 = vtanh.pop %v1415
  %v1423 = vmul.f32 %v1421, %v1329
  %1425 = vrot.lane.b32.xlu0 %v1422, 32
  %v1426 = vpop.permute.xlu0 %1425
  %v1428 = vmul.f32 %v1421, %v1426
  %1430 = vrot.lane.b32.xlu0 %v1428, 32
  %v1431 = vpop.permute.xlu0 %1430
  %v1433 = vadd.f32 %v1423, %v1431
  %v1434 = vtanh.pop %v1433
  %1436 = vrot.lane.b32.xlu0 %v1434, 32
  %v1437 = vpop.permute.xlu0 %1436
  %v1439 = vmul.f32 %v1421, %v1437
  %1441 = vrot.lane.b32.xlu0 %v1439, 64
  %v1442 = vpop.permute.xlu0 %1441
  %1444 = vst.msk [vmem:[%s444] sm:$0xff] %vm27, %v1442
  %s1445 = scalar_lea.vmem [#allocation3], 32
  %v1446 = vld [vmem:[%s1445] sm:$0xff]
  %v1447 = vsel %vm27, %v1442, 0
  %1449 = vmatprep.subr.mxu0 0.0
  %1450 = vmatpush1.msra.mxu0 %v1028
  %1451 = vmatprep.subr.mxu0 0.0
  %1452 = vmatpush1.msra.mxu0 %v1029
  %1453 = vmatprep.subr.mxu0 0.0
  %1454 = vmatpush1.msra.mxu0 %v1030
  %1455 = vmatprep.subr.mxu0 0.0
  %1456 = vmatpush1.msra.mxu0 %v1031
  %1457 = vmatprep.subr.mxu0 0.0
  %1458 = vmatpush1.msra.mxu0 0.0
  %1459 = vmatprep.subr.mxu0 0.0
  %1460 = vmatpush1.msra.mxu0 0.0
  %1461 = vmatprep.subr.mxu0 0.0
  %1462 = vmatpush1.msra.mxu0 0.0
  %1463 = vmatprep.subr.mxu0 0.0
  %1464 = vmatpush1.msra.mxu0 0.0
  %1465 = vmatprep.subr.mxu0 0.0
  %1466 = vmatpush1.msra.mxu0 0.0
  %1467 = vmatprep.subr.mxu0 0.0
  %1468 = vmatpush1.msra.mxu0 0.0
  %1469 = vmatprep.subr.mxu0 0.0
  %1470 = vmatpush1.msra.mxu0 0.0
  %1471 = vmatprep.subr.mxu0 0.0
  %1472 = vmatpush1.msra.mxu0 0.0
  %1473 = vmatprep.subr.mxu0 0.0
  %1474 = vmatpush1.msra.mxu0 0.0
  %1475 = vmatprep.subr.mxu0 0.0
  %1476 = vmatpush1.msra.mxu0 0.0
  %1477 = vmatprep.subr.mxu0 0.0
  %1478 = vmatpush1.msra.mxu0 0.0
  %1479 = vmatprep.subr.mxu0 0.0
  %1480 = vmatpush1.msra.mxu0 0.0
  %1481 = vmatprep.subr.mxu0 0.0
  %1482 = vmatpush1.msra.mxu0 0.0
  %1483 = vmatprep.subr.mxu0 0.0
  %1484 = vmatpush1.msra.mxu0 0.0
  %1485 = vmatprep.subr.mxu0 0.0
  %1486 = vmatpush1.msra.mxu0 0.0
  %1487 = vmatprep.subr.mxu0 0.0
  %1488 = vmatpush1.msra.mxu0 0.0
  %1489 = vmatprep.subr.mxu0 0.0
  %1490 = vmatpush1.msra.mxu0 0.0
  %1491 = vmatprep.subr.mxu0 0.0
  %1492 = vmatpush1.msra.mxu0 0.0
  %1493 = vmatprep.subr.mxu0 0.0
  %1494 = vmatpush1.msra.mxu0 0.0
  %1495 = vmatprep.subr.mxu0 0.0
  %1496 = vmatpush1.msra.mxu0 0.0
  %1497 = vmatprep.subr.mxu0 0.0
  %1498 = vmatpush1.msra.mxu0 0.0
  %1499 = vmatprep.subr.mxu0 0.0
  %1500 = vmatpush1.msra.mxu0 0.0
  %1501 = vmatprep.subr.mxu0 0.0
  %1502 = vmatpush1.msra.mxu0 0.0
  %1503 = vmatprep.subr.mxu0 0.0
  %1504 = vmatpush1.msra.mxu0 0.0
  %1505 = vmatprep.subr.mxu0 0.0
  %1506 = vmatpush1.msra.mxu0 0.0
  %1507 = vmatprep.subr.mxu0 0.0
  %1508 = vmatpush1.msra.mxu0 0.0
  %1509 = vmatprep.subr.mxu0 0.0
  %1510 = vmatpush1.msra.mxu0 0.0
  %1511 = vmatprep.subr.mxu0 0.0
  %1512 = vmatpush1.msra.mxu0 0.0
  %1513 = vmatprep.mubr.f32.mxu0 0.0
  %1514 = vmatmul.mubr.f32.gmra.mrb[0].mxu0 %v1447
  %v1515 = vpop.f32.mrb[0].mxu0
  %v1516 = vadd.f32 0.0, %v1515
  %v1517 = vpop.f32.mrb[0].mxu0
  %1518 = vdwg.mxu0
  %v1519 = vadd.f32 %v1446, %v1516
  %v1520 = vxor.u32 %v1519, 2147483648
  %v1521 = vmul.f32 %v1520, 1.442695
  %v1522 = vpow.pop %v1521
  %v1523 = vadd.f32 %v1522, 1.0
  %v1524 = vrcp.pop %v1523
  %v1525 = vmul.f32 1.0, %v1524
  %v1526 = vtanh.pop %v1519
  %v1527 = vmul.f32 %v1525, %v1433
  %1529 = vrot.lane.b32.xlu0 %v1526, 32
  %v1530 = vpop.permute.xlu0 %1529
  %v1532 = vmul.f32 %v1525, %v1530
  %1534 = vrot.lane.b32.xlu0 %v1532, 32
  %v1535 = vpop.permute.xlu0 %1534
  %v1537 = vadd.f32 %v1527, %v1535
  %v1538 = vtanh.pop %v1537
  %1540 = vrot.lane.b32.xlu0 %v1538, 32
  %v1541 = vpop.permute.xlu0 %1540
  %v1543 = vmul.f32 %v1525, %v1541
  %1545 = vrot.lane.b32.xlu0 %v1543, 64
  %v1546 = vpop.permute.xlu0 %1545
  %1548 = vst.msk [vmem:[%s549] sm:$0xff] %vm27, %v1546
  %s1549 = scalar_lea.vmem [#allocation3], 40
  %v1550 = vld [vmem:[%s1549] sm:$0xff]
  %v1551 = vsel %vm27, %v1546, 0
  %1553 = vmatprep.subr.mxu0 0.0
  %1554 = vmatpush1.msra.mxu0 %v1028
  %1555 = vmatprep.subr.mxu0 0.0
  %1556 = vmatpush1.msra.mxu0 %v1029
  %1557 = vmatprep.subr.mxu0 0.0
  %1558 = vmatpush1.msra.mxu0 %v1030
  %1559 = vmatprep.subr.mxu0 0.0
  %1560 = vmatpush1.msra.mxu0 %v1031
  %1561 = vmatprep.subr.mxu0 0.0
  %1562 = vmatpush1.msra.mxu0 0.0
  %1563 = vmatprep.subr.mxu0 0.0
  %1564 = vmatpush1.msra.mxu0 0.0
  %1565 = vmatprep.subr.mxu0 0.0
  %1566 = vmatpush1.msra.mxu0 0.0
  %1567 = vmatprep.subr.mxu0 0.0
  %1568 = vmatpush1.msra.mxu0 0.0
  %1569 = vmatprep.subr.mxu0 0.0
  %1570 = vmatpush1.msra.mxu0 0.0
  %1571 = vmatprep.subr.mxu0 0.0
  %1572 = vmatpush1.msra.mxu0 0.0
  %1573 = vmatprep.subr.mxu0 0.0
  %1574 = vmatpush1.msra.mxu0 0.0
  %1575 = vmatprep.subr.mxu0 0.0
  %1576 = vmatpush1.msra.mxu0 0.0
  %1577 = vmatprep.subr.mxu0 0.0
  %1578 = vmatpush1.msra.mxu0 0.0
  %1579 = vmatprep.subr.mxu0 0.0
  %1580 = vmatpush1.msra.mxu0 0.0
  %1581 = vmatprep.subr.mxu0 0.0
  %1582 = vmatpush1.msra.mxu0 0.0
  %1583 = vmatprep.subr.mxu0 0.0
  %1584 = vmatpush1.msra.mxu0 0.0
  %1585 = vmatprep.subr.mxu0 0.0
  %1586 = vmatpush1.msra.mxu0 0.0
  %1587 = vmatprep.subr.mxu0 0.0
  %1588 = vmatpush1.msra.mxu0 0.0
  %1589 = vmatprep.subr.mxu0 0.0
  %1590 = vmatpush1.msra.mxu0 0.0
  %1591 = vmatprep.subr.mxu0 0.0
  %1592 = vmatpush1.msra.mxu0 0.0
  %1593 = vmatprep.subr.mxu0 0.0
  %1594 = vmatpush1.msra.mxu0 0.0
  %1595 = vmatprep.subr.mxu0 0.0
  %1596 = vmatpush1.msra.mxu0 0.0
  %1597 = vmatprep.subr.mxu0 0.0
  %1598 = vmatpush1.msra.mxu0 0.0
  %1599 = vmatprep.subr.mxu0 0.0
  %1600 = vmatpush1.msra.mxu0 0.0
  %1601 = vmatprep.subr.mxu0 0.0
  %1602 = vmatpush1.msra.mxu0 0.0
  %1603 = vmatprep.subr.mxu0 0.0
  %1604 = vmatpush1.msra.mxu0 0.0
  %1605 = vmatprep.subr.mxu0 0.0
  %1606 = vmatpush1.msra.mxu0 0.0
  %1607 = vmatprep.subr.mxu0 0.0
  %1608 = vmatpush1.msra.mxu0 0.0
  %1609 = vmatprep.subr.mxu0 0.0
  %1610 = vmatpush1.msra.mxu0 0.0
  %1611 = vmatprep.subr.mxu0 0.0
  %1612 = vmatpush1.msra.mxu0 0.0
  %1613 = vmatprep.subr.mxu0 0.0
  %1614 = vmatpush1.msra.mxu0 0.0
  %1615 = vmatprep.subr.mxu0 0.0
  %1616 = vmatpush1.msra.mxu0 0.0
  %1617 = vmatprep.mubr.f32.mxu0 0.0
  %1618 = vmatmul.mubr.f32.gmra.mrb[0].mxu0 %v1551
  %v1619 = vpop.f32.mrb[0].mxu0
  %v1620 = vadd.f32 0.0, %v1619
  %v1621 = vpop.f32.mrb[0].mxu0
  %1622 = vdwg.mxu0
  %v1623 = vadd.f32 %v1550, %v1620
  %v1624 = vxor.u32 %v1623, 2147483648
  %v1625 = vmul.f32 %v1624, 1.442695
  %v1626 = vpow.pop %v1625
  %v1627 = vadd.f32 %v1626, 1.0
  %v1628 = vrcp.pop %v1627
  %v1629 = vmul.f32 1.0, %v1628
  %v1630 = vtanh.pop %v1623
  %v1631 = vmul.f32 %v1629, %v1537
  %1633 = vrot.lane.b32.xlu0 %v1630, 32
  %v1634 = vpop.permute.xlu0 %1633
  %v1636 = vmul.f32 %v1629, %v1634
  %1638 = vrot.lane.b32.xlu0 %v1636, 32
  %v1639 = vpop.permute.xlu0 %1638
  %v1641 = vadd.f32 %v1631, %v1639
  %v1642 = vtanh.pop %v1641
  %1644 = vrot.lane.b32.xlu0 %v1642, 32
  %v1645 = vpop.permute.xlu0 %1644
  %v1647 = vmul.f32 %v1629, %v1645
  %1649 = vrot.lane.b32.xlu0 %v1647, 64
  %v1650 = vpop.permute.xlu0 %1649
  %1652 = vst.msk [vmem:[%s654] sm:$0xff] %vm27, %v1650
  %s1653 = scalar_lea.vmem [#allocation3], 48
  %v1654 = vld [vmem:[%s1653] sm:$0xff]
  %v1655 = vsel %vm27, %v1650, 0
  %1657 = vmatprep.subr.mxu0 0.0
  %1658 = vmatpush1.msra.mxu0 %v1028
  %1659 = vmatprep.subr.mxu0 0.0
  %1660 = vmatpush1.msra.mxu0 %v1029
  %1661 = vmatprep.subr.mxu0 0.0
  %1662 = vmatpush1.msra.mxu0 %v1030
  %1663 = vmatprep.subr.mxu0 0.0
  %1664 = vmatpush1.msra.mxu0 %v1031
  %1665 = vmatprep.subr.mxu0 0.0
  %1666 = vmatpush1.msra.mxu0 0.0
  %1667 = vmatprep.subr.mxu0 0.0
  %1668 = vmatpush1.msra.mxu0 0.0
  %1669 = vmatprep.subr.mxu0 0.0
  %1670 = vmatpush1.msra.mxu0 0.0
  %1671 = vmatprep.subr.mxu0 0.0
  %1672 = vmatpush1.msra.mxu0 0.0
  %1673 = vmatprep.subr.mxu0 0.0
  %1674 = vmatpush1.msra.mxu0 0.0
  %1675 = vmatprep.subr.mxu0 0.0
  %1676 = vmatpush1.msra.mxu0 0.0
  %1677 = vmatprep.subr.mxu0 0.0
  %1678 = vmatpush1.msra.mxu0 0.0
  %1679 = vmatprep.subr.mxu0 0.0
  %1680 = vmatpush1.msra.mxu0 0.0
  %1681 = vmatprep.subr.mxu0 0.0
  %1682 = vmatpush1.msra.mxu0 0.0
  %1683 = vmatprep.subr.mxu0 0.0
  %1684 = vmatpush1.msra.mxu0 0.0
  %1685 = vmatprep.subr.mxu0 0.0
  %1686 = vmatpush1.msra.mxu0 0.0
  %1687 = vmatprep.subr.mxu0 0.0
  %1688 = vmatpush1.msra.mxu0 0.0
  %1689 = vmatprep.subr.mxu0 0.0
  %1690 = vmatpush1.msra.mxu0 0.0
  %1691 = vmatprep.subr.mxu0 0.0
  %1692 = vmatpush1.msra.mxu0 0.0
  %1693 = vmatprep.subr.mxu0 0.0
  %1694 = vmatpush1.msra.mxu0 0.0
  %1695 = vmatprep.subr.mxu0 0.0
  %1696 = vmatpush1.msra.mxu0 0.0
  %1697 = vmatprep.subr.mxu0 0.0
  %1698 = vmatpush1.msra.mxu0 0.0
  %1699 = vmatprep.subr.mxu0 0.0
  %1700 = vmatpush1.msra.mxu0 0.0
  %1701 = vmatprep.subr.mxu0 0.0
  %1702 = vmatpush1.msra.mxu0 0.0
  %1703 = vmatprep.subr.mxu0 0.0
  %1704 = vmatpush1.msra.mxu0 0.0
  %1705 = vmatprep.subr.mxu0 0.0
  %1706 = vmatpush1.msra.mxu0 0.0
  %1707 = vmatprep.subr.mxu0 0.0
  %1708 = vmatpush1.msra.mxu0 0.0
  %1709 = vmatprep.subr.mxu0 0.0
  %1710 = vmatpush1.msra.mxu0 0.0
  %1711 = vmatprep.subr.mxu0 0.0
  %1712 = vmatpush1.msra.mxu0 0.0
  %1713 = vmatprep.subr.mxu0 0.0
  %1714 = vmatpush1.msra.mxu0 0.0
  %1715 = vmatprep.subr.mxu0 0.0
  %1716 = vmatpush1.msra.mxu0 0.0
  %1717 = vmatprep.subr.mxu0 0.0
  %1718 = vmatpush1.msra.mxu0 0.0
  %1719 = vmatprep.subr.mxu0 0.0
  %1720 = vmatpush1.msra.mxu0 0.0
  %1721 = vmatprep.mubr.f32.mxu0 0.0
  %1722 = vmatmul.mubr.f32.gmra.mrb[0].mxu0 %v1655
  %v1723 = vpop.f32.mrb[0].mxu0
  %v1724 = vadd.f32 0.0, %v1723
  %v1725 = vpop.f32.mrb[0].mxu0
  %1726 = vdwg.mxu0
  %v1727 = vadd.f32 %v1654, %v1724
  %v1728 = vxor.u32 %v1727, 2147483648
  %v1729 = vmul.f32 %v1728, 1.442695
  %v1730 = vpow.pop %v1729
  %v1731 = vadd.f32 %v1730, 1.0
  %v1732 = vrcp.pop %v1731
  %v1733 = vmul.f32 1.0, %v1732
  %v1734 = vtanh.pop %v1727
  %v1735 = vmul.f32 %v1733, %v1641
  %1737 = vrot.lane.b32.xlu0 %v1734, 32
  %v1738 = vpop.permute.xlu0 %1737
  %v1740 = vmul.f32 %v1733, %v1738
  %1742 = vrot.lane.b32.xlu0 %v1740, 32
  %v1743 = vpop.permute.xlu0 %1742
  %v1745 = vadd.f32 %v1735, %v1743
  %v1746 = vtanh.pop %v1745
  %1748 = vrot.lane.b32.xlu0 %v1746, 32
  %v1749 = vpop.permute.xlu0 %1748
  %v1751 = vmul.f32 %v1733, %v1749
  %1753 = vrot.lane.b32.xlu0 %v1751, 64
  %v1754 = vpop.permute.xlu0 %1753
  %1756 = vst.msk [vmem:[%s759] sm:$0xff] %vm27, %v1754
  %s1757 = scalar_lea.vmem [#allocation3], 56
  %v1758 = vld [vmem:[%s1757] sm:$0xff]
  %v1759 = vsel %vm27, %v1754, 0
  %1761 = vmatprep.subr.mxu0 0.0
  %1762 = vmatpush1.msra.mxu0 %v1028
  %1763 = vmatprep.subr.mxu0 0.0
  %1764 = vmatpush1.msra.mxu0 %v1029
  %1765 = vmatprep.subr.mxu0 0.0
  %1766 = vmatpush1.msra.mxu0 %v1030
  %1767 = vmatprep.subr.mxu0 0.0
  %1768 = vmatpush1.msra.mxu0 %v1031
  %1769 = vmatprep.subr.mxu0 0.0
  %1770 = vmatpush1.msra.mxu0 0.0
  %1771 = vmatprep.subr.mxu0 0.0
  %1772 = vmatpush1.msra.mxu0 0.0
  %1773 = vmatprep.subr.mxu0 0.0
  %1774 = vmatpush1.msra.mxu0 0.0
  %1775 = vmatprep.subr.mxu0 0.0
  %1776 = vmatpush1.msra.mxu0 0.0
  %1777 = vmatprep.subr.mxu0 0.0
  %1778 = vmatpush1.msra.mxu0 0.0
  %1779 = vmatprep.subr.mxu0 0.0
  %1780 = vmatpush1.msra.mxu0 0.0
  %1781 = vmatprep.subr.mxu0 0.0
  %1782 = vmatpush1.msra.mxu0 0.0
  %1783 = vmatprep.subr.mxu0 0.0
  %1784 = vmatpush1.msra.mxu0 0.0
  %1785 = vmatprep.subr.mxu0 0.0
  %1786 = vmatpush1.msra.mxu0 0.0
  %1787 = vmatprep.subr.mxu0 0.0
  %1788 = vmatpush1.msra.mxu0 0.0
  %1789 = vmatprep.subr.mxu0 0.0
  %1790 = vmatpush1.msra.mxu0 0.0
  %1791 = vmatprep.subr.mxu0 0.0
  %1792 = vmatpush1.msra.mxu0 0.0
  %1793 = vmatprep.subr.mxu0 0.0
  %1794 = vmatpush1.msra.mxu0 0.0
  %1795 = vmatprep.subr.mxu0 0.0
  %1796 = vmatpush1.msra.mxu0 0.0
  %1797 = vmatprep.subr.mxu0 0.0
  %1798 = vmatpush1.msra.mxu0 0.0
  %1799 = vmatprep.subr.mxu0 0.0
  %1800 = vmatpush1.msra.mxu0 0.0
  %1801 = vmatprep.subr.mxu0 0.0
  %1802 = vmatpush1.msra.mxu0 0.0
  %1803 = vmatprep.subr.mxu0 0.0
  %1804 = vmatpush1.msra.mxu0 0.0
  %1805 = vmatprep.subr.mxu0 0.0
  %1806 = vmatpush1.msra.mxu0 0.0
  %1807 = vmatprep.subr.mxu0 0.0
  %1808 = vmatpush1.msra.mxu0 0.0
  %1809 = vmatprep.subr.mxu0 0.0
  %1810 = vmatpush1.msra.mxu0 0.0
  %1811 = vmatprep.subr.mxu0 0.0
  %1812 = vmatpush1.msra.mxu0 0.0
  %1813 = vmatprep.subr.mxu0 0.0
  %1814 = vmatpush1.msra.mxu0 0.0
  %1815 = vmatprep.subr.mxu0 0.0
  %1816 = vmatpush1.msra.mxu0 0.0
  %1817 = vmatprep.subr.mxu0 0.0
  %1818 = vmatpush1.msra.mxu0 0.0
  %1819 = vmatprep.subr.mxu0 0.0
  %1820 = vmatpush1.msra.mxu0 0.0
  %1821 = vmatprep.subr.mxu0 0.0
  %1822 = vmatpush1.msra.mxu0 0.0
  %1823 = vmatprep.subr.mxu0 0.0
  %1824 = vmatpush1.msra.mxu0 0.0
  %1825 = vmatprep.mubr.f32.mxu0 0.0
  %1826 = vmatmul.mubr.f32.gmra.mrb[0].mxu0 %v1759
  %v1827 = vpop.f32.mrb[0].mxu0
  %v1828 = vadd.f32 0.0, %v1827
  %v1829 = vpop.f32.mrb[0].mxu0
  %1830 = vdwg.mxu0
  %v1831 = vadd.f32 %v1758, %v1828
  %v1832 = vxor.u32 %v1831, 2147483648
  %v1833 = vmul.f32 %v1832, 1.442695
  %v1834 = vpow.pop %v1833
  %v1835 = vadd.f32 %v1834, 1.0
  %v1836 = vrcp.pop %v1835
  %v1837 = vmul.f32 1.0, %v1836
  %v1838 = vtanh.pop %v1831
  %v1839 = vmul.f32 %v1837, %v1745
  %1841 = vrot.lane.b32.xlu0 %v1838, 32
  %v1842 = vpop.permute.xlu0 %1841
  %v1844 = vmul.f32 %v1837, %v1842
  %1846 = vrot.lane.b32.xlu0 %v1844, 32
  %v1847 = vpop.permute.xlu0 %1846
  %v1849 = vadd.f32 %v1839, %v1847
  %v1850 = vtanh.pop %v1849
  %1852 = vrot.lane.b32.xlu0 %v1850, 32
  %v1853 = vpop.permute.xlu0 %1852
  %v1855 = vmul.f32 %v1837, %v1853
  %1857 = vrot.lane.b32.xlu0 %v1855, 64
  %v1858 = vpop.permute.xlu0 %1857
  %1860 = vst.msk [vmem:[%s864] sm:$0xff] %vm27, %v1858
  %s1861 = scalar_lea.vmem %s5, 8
  %1862 = vst.msk [vmem:[%s1861] sm:$0xff] %vm27, %v1858
  %1864 = vrot.lane.b32.xlu0 %v1849, 96
  %v1865 = vpop.permute.xlu0 %1864
  %s1867 = scalar_lea.vmem %s6, 8
  %1868 = vst.msk [vmem:[%s1867] sm:$0xff] %vm27, %v1865
  // Predicated region
  $region22: #{encoder_forward.1} parent=0 // pred_check
    _
  $region23: #{encoder_forward.1} parent=0 // pred_check_branch
    %1870 = sbr.rel (0) target = $region25
  $region24: #{encoder_forward.1} parent=0 // pred_region
    _
  $region25: #{encoder_forward.1} parent=0 // pred_fallthru
    _
  // Predicated region
  $region26: #{encoder_forward.1} parent=0 // pred_check
    _
  $region27: #{encoder_forward.1} parent=0 // pred_check_branch
    %1872 = sbr.rel (0) target = $region29
  $region28: #{encoder_forward.1} parent=0 // pred_region
    _
  $region29: #{encoder_forward.1} parent=0 // pred_fallthru
    _
  // Predicated region
  $region30: #{encoder_forward.1} parent=0 // pred_check
    _
  $region31: #{encoder_forward.1} parent=0 // pred_check_branch
    %1874 = sbr.rel (0) target = $region33
  $region32: #{encoder_forward.1} parent=0 // pred_region
    _
  $region33: #{encoder_forward.1} parent=0 // pred_fallthru
    _
  // Predicated region
  $region34: #{encoder_forward.1} parent=0 // pred_check
    _
  $region35: #{encoder_forward.1} parent=0 // pred_check_branch
    %1876 = sbr.rel (0) target = $region37
  $region36: #{encoder_forward.1} parent=0 // pred_region
    _
  $region37: #{encoder_forward.1} parent=0 // pred_fallthru
    _

</llo_original>
